<compile_context>
chip_gen: v5e
topology: v5e:2x2
jax: 0.10.0
libtpu: 0.0.40
codegen_flags: <defaults>
</compile_context>

<pallas_src>
import functools

import jax
import jax.numpy as jnp
import numpy as np
from jax import lax
from jax.experimental import pallas as pl
from jax.experimental.pallas import tpu as pltpu


# ----------------------------------------------------------------------------
# Pallas kernel: fused channel-pool + k x k conv + sigmoid + rescale
# ----------------------------------------------------------------------------
def _cbam_spatial_kernel(x_ref, w_ref, mask_ref, o_ref, *, k, W):
    """Fused CBAM spatial attention for one lane-dense (NB, C, H*W) block.

    x_ref:    (NB, C, HW) input block, native dtype, VMEM.
    w_ref:    (2*k*k,) f32 conv weights in SMEM; order (c_in, kh, kw) with
              c_in == 0 -> avg plane, c_in == 1 -> max plane.
    mask_ref: (k, HW) f32 0/1 column-validity masks, one per kw offset.
    o_ref:    (NB, C, HW) output block.
    """
    nb, C, HW = x_ref.shape
    p = k // 2

    zp = jnp.zeros((1, p), jnp.float32)          # pad for the kw (column) taps
    zpw = jnp.zeros((1, p * W), jnp.float32)     # pad for the kh (row) taps

    for b in range(nb):                          # static unroll over samples
        xs = x_ref[b]                            # (C, HW), native dtype

        # ---- channel pooling: f32 accumulation per 8-row slab; never
        # materializes a full f32 copy of the (C, HW) block. -----------------
        g = 8 if C % 8 == 0 else 1
        psum = xs[0:g, :].astype(jnp.float32)
        pmax = xs[0:g, :]
        for s in range(1, C // g):
            blk = xs[s * g:(s + 1) * g, :]
            psum = psum + blk.astype(jnp.float32)
            pmax = jnp.maximum(pmax, blk)
        avg = jnp.sum(psum, axis=0, keepdims=True) * (1.0 / C)        # (1, HW)
        mx = jnp.max(pmax.astype(jnp.float32), axis=0, keepdims=True)  # (1, HW)

        # ---- k x k "same" conv over the two pooled planes, in the flat
        # lane-dense layout.  kw shifts (k masked lane shifts per plane) are
        # hoisted out of the tap loop; kh shifts are plain lane slices of a
        # zero-extended flat plane so rows never bleed into each other. ------
        avg_e = jnp.concatenate([zp, avg, zp], axis=1)   # (1, HW + 2p)
        max_e = jnp.concatenate([zp, mx, zp], axis=1)

        accs = [jnp.zeros((1, HW), jnp.float32) for _ in range(4)]
        for dwi in range(k):                               # kw tap (hoisted)
            msk = mask_ref[dwi:dwi + 1, :]                 # (1, HW) 0/1
            a_dw = avg_e[:, dwi:dwi + HW] * msk
            m_dw = max_e[:, dwi:dwi + HW] * msk
            A = jnp.concatenate([zpw, a_dw, zpw], axis=1)  # (1, HW + 2pW)
            M = jnp.concatenate([zpw, m_dw, zpw], axis=1)
            for dhi in range(k):                           # kh tap
                st = dhi * W
                w_avg = w_ref[dhi * k + dwi]               # SMEM scalar reads
                w_max = w_ref[k * k + dhi * k + dwi]
                t = dhi & 1                                # split the add chain
                accs[t] = accs[t] + w_avg * A[:, st:st + HW]
                accs[2 + t] = accs[2 + t] + w_max * M[:, st:st + HW]
        logits = (accs[0] + accs[1]) + (accs[2] + accs[3])  # (1, HW) f32

        # Sigmoid: exp on the EUP; flip approx=True to also keep the
        # reciprocal on the EUP (at slightly reduced precision).
        att = pl.reciprocal(1.0 + jnp.exp(-logits), approx=False)

        # ---- rescale in the input dtype (att downcast exactly once) --------
        o_ref[b] = (xs * att.astype(xs.dtype)).astype(o_ref.dtype)


def cbam_spatial_pallas(x, weight):
    """x: (N, C, H, W); weight: (1, 2, k, k) PyTorch OIHW layout, no bias."""
    N, C, H, W = x.shape
    k = weight.shape[-1]
    assert weight.shape == (1, 2, k, k), weight.shape
    pad = k // 2
    HW = H * W

    # Lane-dense view of x: (N, C, H*W).  Free for contiguous NCHW data.
    x3 = x.reshape(N, C, HW)

    # Conv weights flattened to (c_in, kh, kw) order for SMEM scalar reads.
    w_flat = weight.reshape(2 * k * k).astype(jnp.float32)

    # Column-validity masks for the kw taps in flat layout: for tap offset
    # dw = dwi - pad, flat position j (column j % W) is valid iff
    # 0 <= (j % W) + dw < W.  Tiny (k, HW) constant built at trace time.
    cols = np.arange(HW, dtype=np.int64) % W
    masks = np.stack([((cols + (dwi - pad) >= 0) & (cols + (dwi - pad) < W))
                      for dwi in range(k)]).astype(np.float32)
    masks = jnp.asarray(masks)

    # Pack several samples per grid step when a sample is small (bigger, more
    # efficient blocks; ~0.35us per-step overhead otherwise), but keep >= 2
    # grid steps so both v7x TensorCores get work and the pipeline has depth.
    # Total buffering (in + out, double-buffered) stays far below 64 MiB.
    itemsize = jnp.dtype(x.dtype).itemsize
    sample_bytes = C * HW * itemsize
    target_block_bytes = 4 * 1024 * 1024
    nb = int(min(N, 8, max(1, target_block_bytes // max(1, sample_bytes))))
    while nb > 1 and (N // nb) < 2:
        nb -= 1
    while N % nb:
        nb -= 1
    grid = (N // nb,)

    cost = pl.CostEstimate(
        flops=int(N * HW * (3 * C + 4 * k * k + 8)),
        transcendentals=int(N * HW),
        bytes_accessed=int(2 * x.size * itemsize + w_flat.size * 4 + masks.size * 4),
    )

    # TODO(synk): single samples whose (C, H*W) slab alone approaches ~1/4 of
    # VMEM (e.g. C=64 @ 224x224 f32) additionally need spatial tiling with a
    # k//2-row halo (overlapping/Element index_map or manual DMA); typical
    # CBAM shapes fit comfortably now that the lane-dense layout removed the
    # W<128 padding blow-up.
    out = pl.pallas_call(
        functools.partial(_cbam_spatial_kernel, k=k, W=W),
        out_shape=jax.ShapeDtypeStruct((N, C, HW), x.dtype),
        grid=grid,
        in_specs=[
            pl.BlockSpec((nb, C, HW), lambda i: (i, 0, 0)),
            pl.BlockSpec(memory_space=pltpu.MemorySpace.SMEM),
            pl.BlockSpec((k, HW), lambda i: (0, 0)),
        ],
        out_specs=pl.BlockSpec((nb, C, HW), lambda i: (i, 0, 0)),
        compiler_params=pltpu.CompilerParams(
            dimension_semantics=("parallel",),
            vmem_limit_bytes=64 * 1024 * 1024,
        ),
        cost_estimate=cost,
    )(x3, w_flat, masks)
    return out.reshape(N, C, H, W)


# ----------------------------------------------------------------------------
# Module wrapper (mirrors the PyTorch CBAMSpatial interface)
# ----------------------------------------------------------------------------
class CBAMSpatialPallas:
    def __init__(self, in_channels, kernel_size=7, seed=0):
        del in_channels  # unused by the reference module as well
        self.kernel_size = kernel_size
        fan_in = 2 * kernel_size * kernel_size
        bound = float(1.0 / np.sqrt(fan_in))
        key = jax.random.PRNGKey(seed)
        # Deterministic stand-in for nn.Conv2d's kaiming_uniform init.
        self.weight = jax.random.uniform(
            key, (1, 2, kernel_size, kernel_size), jnp.float32,
            minval=-bound, maxval=bound)

    def __call__(self, x):
        return cbam_spatial_pallas(x, self.weight)


# ----------------------------------------------------------------------------
# Pure-JAX reference for the correctness check
# ----------------------------------------------------------------------------
def cbam_spatial_ref(x, weight):
    avg = jnp.mean(x, axis=1, keepdims=True)
    mx = jnp.max(x, axis=1, keepdims=True)
    s = jnp.concatenate([avg, mx], axis=1)                  # (N, 2, H, W)
    k = weight.shape[-1]
    pad = k // 2
    out = lax.conv_general_dilated(
        s, weight, window_strides=(1, 1),
        padding=((pad, pad), (pad, pad)),
        dimension_numbers=("NCHW", "OIHW", "NCHW"))         # (N, 1, H, W)
    return x * jax.nn.sigmoid(out)


if __name__ == "__main__":
    def _check(N, C, H, W, k, seed):
        x = jax.random.normal(jax.random.PRNGKey(0), (N, C, H, W), jnp.float32)
        mod = CBAMSpatialPallas(in_channels=C, kernel_size=k, seed=seed)
        y = jax.block_until_ready(mod(x))
        assert y.shape == (N, C, H, W), y.shape
        y_ref = cbam_spatial_ref(x, mod.weight)
        np.testing.assert_allclose(np.asarray(y), np.asarray(y_ref),
                                   rtol=1e-5, atol=1e-5)

    _check(2, 4, 16, 16, 7, seed=0)   # nominal small config
    _check(4, 8, 8, 8, 7, seed=1)     # exercises sample packing (NB=2) + 8-row slab pooling
    print("KERNEL_OK")
</pallas_src>

<mosaic_0001>
module attributes {stable_mosaic.version = 11 : i64} {
  func.func @_cbam_spatial_kernel(%arg0: i32, %arg1: memref<1x4x256xf32, #tpu.memory_space<vmem>>, %arg2: memref<98xf32, #tpu.memory_space<smem>>, %arg3: memref<7x256xf32, #tpu.memory_space<vmem>>, %arg4: memref<1x4x256xf32, #tpu.memory_space<vmem>>) attributes {dimension_semantics = [#tpu.dimension_semantics<parallel>], iteration_bounds = array<i64: 2>, scalar_prefetch = 0 : i64, scratch_operands = 0 : i64, tpu.core_type = #tpu.core_type<tc>, window_params = [{transform_indices = @transform_0, window_bounds = array<i64: 1, 4, 256>}, {transform_indices = @transform_1, window_bounds = array<i64: 98>}, {pipeline_mode = #tpu.pipeline_mode<synchronous>, transform_indices = @transform_2, window_bounds = array<i64: 7, 256>}, {transform_indices = @transform_3, window_bounds = array<i64: 1, 4, 256>}]} {
    %cst = arith.constant 0.000000e+00 : f32
    %0 = vector.broadcast %cst : f32 to vector<1x3xf32>
    %cst_0 = arith.constant 0.000000e+00 : f32
    %1 = vector.broadcast %cst_0 : f32 to vector<1x48xf32>
    %c0 = arith.constant 0 : index
    %c0_1 = arith.constant 0 : index
    %c0_2 = arith.constant 0 : index
    %2 = vector.load %arg1[%c0, %c0_1, %c0_2] : memref<1x4x256xf32, #tpu.memory_space<vmem>>, vector<1x4x256xf32>
    %3 = vector.shape_cast %2 : vector<1x4x256xf32> to vector<4x256xf32>
    %4 = vector.extract_strided_slice %3 {offsets = [0, 0], sizes = [1, 256], strides = [1, 1]} : vector<4x256xf32> to vector<1x256xf32>
    %5 = vector.extract_strided_slice %3 {offsets = [0, 0], sizes = [1, 256], strides = [1, 1]} : vector<4x256xf32> to vector<1x256xf32>
    %6 = vector.extract_strided_slice %3 {offsets = [1, 0], sizes = [1, 256], strides = [1, 1]} : vector<4x256xf32> to vector<1x256xf32>
    %7 = arith.addf %4, %6 : vector<1x256xf32>
    %8 = arith.maximumf %5, %6 : vector<1x256xf32>
    %9 = vector.extract_strided_slice %3 {offsets = [2, 0], sizes = [1, 256], strides = [1, 1]} : vector<4x256xf32> to vector<1x256xf32>
    %10 = arith.addf %7, %9 : vector<1x256xf32>
    %11 = arith.maximumf %8, %9 : vector<1x256xf32>
    %12 = vector.extract_strided_slice %3 {offsets = [3, 0], sizes = [1, 256], strides = [1, 1]} : vector<4x256xf32> to vector<1x256xf32>
    %13 = arith.addf %10, %12 : vector<1x256xf32>
    %14 = arith.maximumf %11, %12 : vector<1x256xf32>
    %cst_3 = arith.constant dense<0.000000e+00> : vector<256xf32>
    %15 = vector.multi_reduction <add>, %13, %cst_3 [0] : vector<1x256xf32> to vector<256xf32>
    %16 = vector.shape_cast %15 : vector<256xf32> to vector<1x256xf32>
    %cst_4 = arith.constant 2.500000e-01 : f32
    %17 = vector.broadcast %cst_4 : f32 to vector<1x256xf32>
    %18 = arith.mulf %16, %17 : vector<1x256xf32>
    %cst_5 = arith.constant dense<0xFF800000> : vector<256xf32>
    %19 = vector.multi_reduction <maximumf>, %14, %cst_5 [0] : vector<1x256xf32> to vector<256xf32>
    %20 = vector.shape_cast %19 : vector<256xf32> to vector<1x256xf32>
    %21 = tpu.concatenate %0, %18, %0 in 1 : vector<1x3xf32>, vector<1x256xf32>, vector<1x3xf32> -> vector<1x262xf32>
    %22 = tpu.concatenate %0, %20, %0 in 1 : vector<1x3xf32>, vector<1x256xf32>, vector<1x3xf32> -> vector<1x262xf32>
    %cst_6 = arith.constant 0.000000e+00 : f32
    %23 = vector.broadcast %cst_6 : f32 to vector<1x256xf32>
    %cst_7 = arith.constant 0.000000e+00 : f32
    %24 = vector.broadcast %cst_7 : f32 to vector<1x256xf32>
    %cst_8 = arith.constant 0.000000e+00 : f32
    %25 = vector.broadcast %cst_8 : f32 to vector<1x256xf32>
    %cst_9 = arith.constant 0.000000e+00 : f32
    %26 = vector.broadcast %cst_9 : f32 to vector<1x256xf32>
    %c0_10 = arith.constant 0 : index
    %c0_11 = arith.constant 0 : index
    %27 = vector.load %arg3[%c0_10, %c0_11] : memref<7x256xf32, #tpu.memory_space<vmem>>, vector<1x256xf32>
    %28 = vector.extract_strided_slice %21 {offsets = [0, 0], sizes = [1, 256], strides = [1, 1]} : vector<1x262xf32> to vector<1x256xf32>
    %29 = arith.mulf %28, %27 : vector<1x256xf32>
    %30 = vector.extract_strided_slice %22 {offsets = [0, 0], sizes = [1, 256], strides = [1, 1]} : vector<1x262xf32> to vector<1x256xf32>
    %31 = arith.mulf %30, %27 : vector<1x256xf32>
    %32 = tpu.concatenate %1, %29, %1 in 1 : vector<1x48xf32>, vector<1x256xf32>, vector<1x48xf32> -> vector<1x352xf32>
    %33 = tpu.concatenate %1, %31, %1 in 1 : vector<1x48xf32>, vector<1x256xf32>, vector<1x48xf32> -> vector<1x352xf32>
    %c0_12 = arith.constant 0 : index
    %34 = memref.load %arg2[%c0_12] : memref<98xf32, #tpu.memory_space<smem>>
    %c49 = arith.constant 49 : index
    %35 = memref.load %arg2[%c49] : memref<98xf32, #tpu.memory_space<smem>>
    %36 = vector.extract_strided_slice %32 {offsets = [0, 0], sizes = [1, 256], strides = [1, 1]} : vector<1x352xf32> to vector<1x256xf32>
    %37 = vector.broadcast %34 : f32 to vector<1x256xf32>
    %38 = arith.mulf %37, %36 : vector<1x256xf32>
    %39 = arith.addf %23, %38 : vector<1x256xf32>
    %40 = vector.extract_strided_slice %33 {offsets = [0, 0], sizes = [1, 256], strides = [1, 1]} : vector<1x352xf32> to vector<1x256xf32>
    %41 = vector.broadcast %35 : f32 to vector<1x256xf32>
    %42 = arith.mulf %41, %40 : vector<1x256xf32>
    %43 = arith.addf %25, %42 : vector<1x256xf32>
    %c7 = arith.constant 7 : index
    %44 = memref.load %arg2[%c7] : memref<98xf32, #tpu.memory_space<smem>>
    %c56 = arith.constant 56 : index
    %45 = memref.load %arg2[%c56] : memref<98xf32, #tpu.memory_space<smem>>
    %46 = vector.extract_strided_slice %32 {offsets = [0, 16], sizes = [1, 256], strides = [1, 1]} : vector<1x352xf32> to vector<1x256xf32>
    %47 = vector.broadcast %44 : f32 to vector<1x256xf32>
    %48 = arith.mulf %47, %46 : vector<1x256xf32>
    %49 = arith.addf %24, %48 : vector<1x256xf32>
    %50 = vector.extract_strided_slice %33 {offsets = [0, 16], sizes = [1, 256], strides = [1, 1]} : vector<1x352xf32> to vector<1x256xf32>
    %51 = vector.broadcast %45 : f32 to vector<1x256xf32>
    %52 = arith.mulf %51, %50 : vector<1x256xf32>
    %53 = arith.addf %26, %52 : vector<1x256xf32>
    %c14 = arith.constant 14 : index
    %54 = memref.load %arg2[%c14] : memref<98xf32, #tpu.memory_space<smem>>
    %c63 = arith.constant 63 : index
    %55 = memref.load %arg2[%c63] : memref<98xf32, #tpu.memory_space<smem>>
    %56 = vector.extract_strided_slice %32 {offsets = [0, 32], sizes = [1, 256], strides = [1, 1]} : vector<1x352xf32> to vector<1x256xf32>
    %57 = vector.broadcast %54 : f32 to vector<1x256xf32>
    %58 = arith.mulf %57, %56 : vector<1x256xf32>
    %59 = arith.addf %39, %58 : vector<1x256xf32>
    %60 = vector.extract_strided_slice %33 {offsets = [0, 32], sizes = [1, 256], strides = [1, 1]} : vector<1x352xf32> to vector<1x256xf32>
    %61 = vector.broadcast %55 : f32 to vector<1x256xf32>
    %62 = arith.mulf %61, %60 : vector<1x256xf32>
    %63 = arith.addf %43, %62 : vector<1x256xf32>
    %c21 = arith.constant 21 : index
    %64 = memref.load %arg2[%c21] : memref<98xf32, #tpu.memory_space<smem>>
    %c70 = arith.constant 70 : index
    %65 = memref.load %arg2[%c70] : memref<98xf32, #tpu.memory_space<smem>>
    %66 = vector.extract_strided_slice %32 {offsets = [0, 48], sizes = [1, 256], strides = [1, 1]} : vector<1x352xf32> to vector<1x256xf32>
    %67 = vector.broadcast %64 : f32 to vector<1x256xf32>
    %68 = arith.mulf %67, %66 : vector<1x256xf32>
    %69 = arith.addf %49, %68 : vector<1x256xf32>
    %70 = vector.extract_strided_slice %33 {offsets = [0, 48], sizes = [1, 256], strides = [1, 1]} : vector<1x352xf32> to vector<1x256xf32>
    %71 = vector.broadcast %65 : f32 to vector<1x256xf32>
    %72 = arith.mulf %71, %70 : vector<1x256xf32>
    %73 = arith.addf %53, %72 : vector<1x256xf32>
    %c28 = arith.constant 28 : index
    %74 = memref.load %arg2[%c28] : memref<98xf32, #tpu.memory_space<smem>>
    %c77 = arith.constant 77 : index
    %75 = memref.load %arg2[%c77] : memref<98xf32, #tpu.memory_space<smem>>
    %76 = vector.extract_strided_slice %32 {offsets = [0, 64], sizes = [1, 256], strides = [1, 1]} : vector<1x352xf32> to vector<1x256xf32>
    %77 = vector.broadcast %74 : f32 to vector<1x256xf32>
    %78 = arith.mulf %77, %76 : vector<1x256xf32>
    %79 = arith.addf %59, %78 : vector<1x256xf32>
    %80 = vector.extract_strided_slice %33 {offsets = [0, 64], sizes = [1, 256], strides = [1, 1]} : vector<1x352xf32> to vector<1x256xf32>
    %81 = vector.broadcast %75 : f32 to vector<1x256xf32>
    %82 = arith.mulf %81, %80 : vector<1x256xf32>
    %83 = arith.addf %63, %82 : vector<1x256xf32>
    %c35 = arith.constant 35 : index
    %84 = memref.load %arg2[%c35] : memref<98xf32, #tpu.memory_space<smem>>
    %c84 = arith.constant 84 : index
    %85 = memref.load %arg2[%c84] : memref<98xf32, #tpu.memory_space<smem>>
    %86 = vector.extract_strided_slice %32 {offsets = [0, 80], sizes = [1, 256], strides = [1, 1]} : vector<1x352xf32> to vector<1x256xf32>
    %87 = vector.broadcast %84 : f32 to vector<1x256xf32>
    %88 = arith.mulf %87, %86 : vector<1x256xf32>
    %89 = arith.addf %69, %88 : vector<1x256xf32>
    %90 = vector.extract_strided_slice %33 {offsets = [0, 80], sizes = [1, 256], strides = [1, 1]} : vector<1x352xf32> to vector<1x256xf32>
    %91 = vector.broadcast %85 : f32 to vector<1x256xf32>
    %92 = arith.mulf %91, %90 : vector<1x256xf32>
    %93 = arith.addf %73, %92 : vector<1x256xf32>
    %c42 = arith.constant 42 : index
    %94 = memref.load %arg2[%c42] : memref<98xf32, #tpu.memory_space<smem>>
    %c91 = arith.constant 91 : index
    %95 = memref.load %arg2[%c91] : memref<98xf32, #tpu.memory_space<smem>>
    %96 = vector.extract_strided_slice %32 {offsets = [0, 96], sizes = [1, 256], strides = [1, 1]} : vector<1x352xf32> to vector<1x256xf32>
    %97 = vector.broadcast %94 : f32 to vector<1x256xf32>
    %98 = arith.mulf %97, %96 : vector<1x256xf32>
    %99 = arith.addf %79, %98 : vector<1x256xf32>
    %100 = vector.extract_strided_slice %33 {offsets = [0, 96], sizes = [1, 256], strides = [1, 1]} : vector<1x352xf32> to vector<1x256xf32>
    %101 = vector.broadcast %95 : f32 to vector<1x256xf32>
    %102 = arith.mulf %101, %100 : vector<1x256xf32>
    %103 = arith.addf %83, %102 : vector<1x256xf32>
    %c1 = arith.constant 1 : index
    %c0_13 = arith.constant 0 : index
    %104 = vector.load %arg3[%c1, %c0_13] : memref<7x256xf32, #tpu.memory_space<vmem>>, vector<1x256xf32>
    %105 = vector.extract_strided_slice %21 {offsets = [0, 1], sizes = [1, 256], strides = [1, 1]} : vector<1x262xf32> to vector<1x256xf32>
    %106 = arith.mulf %105, %104 : vector<1x256xf32>
    %107 = vector.extract_strided_slice %22 {offsets = [0, 1], sizes = [1, 256], strides = [1, 1]} : vector<1x262xf32> to vector<1x256xf32>
    %108 = arith.mulf %107, %104 : vector<1x256xf32>
    %109 = tpu.concatenate %1, %106, %1 in 1 : vector<1x48xf32>, vector<1x256xf32>, vector<1x48xf32> -> vector<1x352xf32>
    %110 = tpu.concatenate %1, %108, %1 in 1 : vector<1x48xf32>, vector<1x256xf32>, vector<1x48xf32> -> vector<1x352xf32>
    %c1_14 = arith.constant 1 : index
    %111 = memref.load %arg2[%c1_14] : memref<98xf32, #tpu.memory_space<smem>>
    %c50 = arith.constant 50 : index
    %112 = memref.load %arg2[%c50] : memref<98xf32, #tpu.memory_space<smem>>
    %113 = vector.extract_strided_slice %109 {offsets = [0, 0], sizes = [1, 256], strides = [1, 1]} : vector<1x352xf32> to vector<1x256xf32>
    %114 = vector.broadcast %111 : f32 to vector<1x256xf32>
    %115 = arith.mulf %114, %113 : vector<1x256xf32>
    %116 = arith.addf %99, %115 : vector<1x256xf32>
    %117 = vector.extract_strided_slice %110 {offsets = [0, 0], sizes = [1, 256], strides = [1, 1]} : vector<1x352xf32> to vector<1x256xf32>
    %118 = vector.broadcast %112 : f32 to vector<1x256xf32>
    %119 = arith.mulf %118, %117 : vector<1x256xf32>
    %120 = arith.addf %103, %119 : vector<1x256xf32>
    %c8 = arith.constant 8 : index
    %121 = memref.load %arg2[%c8] : memref<98xf32, #tpu.memory_space<smem>>
    %c57 = arith.constant 57 : index
    %122 = memref.load %arg2[%c57] : memref<98xf32, #tpu.memory_space<smem>>
    %123 = vector.extract_strided_slice %109 {offsets = [0, 16], sizes = [1, 256], strides = [1, 1]} : vector<1x352xf32> to vector<1x256xf32>
    %124 = vector.broadcast %121 : f32 to vector<1x256xf32>
    %125 = arith.mulf %124, %123 : vector<1x256xf32>
    %126 = arith.addf %89, %125 : vector<1x256xf32>
    %127 = vector.extract_strided_slice %110 {offsets = [0, 16], sizes = [1, 256], strides = [1, 1]} : vector<1x352xf32> to vector<1x256xf32>
    %128 = vector.broadcast %122 : f32 to vector<1x256xf32>
    %129 = arith.mulf %128, %127 : vector<1x256xf32>
    %130 = arith.addf %93, %129 : vector<1x256xf32>
    %c15 = arith.constant 15 : index
    %131 = memref.load %arg2[%c15] : memref<98xf32, #tpu.memory_space<smem>>
    %c64 = arith.constant 64 : index
    %132 = memref.load %arg2[%c64] : memref<98xf32, #tpu.memory_space<smem>>
    %133 = vector.extract_strided_slice %109 {offsets = [0, 32], sizes = [1, 256], strides = [1, 1]} : vector<1x352xf32> to vector<1x256xf32>
    %134 = vector.broadcast %131 : f32 to vector<1x256xf32>
    %135 = arith.mulf %134, %133 : vector<1x256xf32>
    %136 = arith.addf %116, %135 : vector<1x256xf32>
    %137 = vector.extract_strided_slice %110 {offsets = [0, 32], sizes = [1, 256], strides = [1, 1]} : vector<1x352xf32> to vector<1x256xf32>
    %138 = vector.broadcast %132 : f32 to vector<1x256xf32>
    %139 = arith.mulf %138, %137 : vector<1x256xf32>
    %140 = arith.addf %120, %139 : vector<1x256xf32>
    %c22 = arith.constant 22 : index
    %141 = memref.load %arg2[%c22] : memref<98xf32, #tpu.memory_space<smem>>
    %c71 = arith.constant 71 : index
    %142 = memref.load %arg2[%c71] : memref<98xf32, #tpu.memory_space<smem>>
    %143 = vector.extract_strided_slice %109 {offsets = [0, 48], sizes = [1, 256], strides = [1, 1]} : vector<1x352xf32> to vector<1x256xf32>
    %144 = vector.broadcast %141 : f32 to vector<1x256xf32>
    %145 = arith.mulf %144, %143 : vector<1x256xf32>
    %146 = arith.addf %126, %145 : vector<1x256xf32>
    %147 = vector.extract_strided_slice %110 {offsets = [0, 48], sizes = [1, 256], strides = [1, 1]} : vector<1x352xf32> to vector<1x256xf32>
    %148 = vector.broadcast %142 : f32 to vector<1x256xf32>
    %149 = arith.mulf %148, %147 : vector<1x256xf32>
    %150 = arith.addf %130, %149 : vector<1x256xf32>
    %c29 = arith.constant 29 : index
    %151 = memref.load %arg2[%c29] : memref<98xf32, #tpu.memory_space<smem>>
    %c78 = arith.constant 78 : index
    %152 = memref.load %arg2[%c78] : memref<98xf32, #tpu.memory_space<smem>>
    %153 = vector.extract_strided_slice %109 {offsets = [0, 64], sizes = [1, 256], strides = [1, 1]} : vector<1x352xf32> to vector<1x256xf32>
    %154 = vector.broadcast %151 : f32 to vector<1x256xf32>
    %155 = arith.mulf %154, %153 : vector<1x256xf32>
    %156 = arith.addf %136, %155 : vector<1x256xf32>
    %157 = vector.extract_strided_slice %110 {offsets = [0, 64], sizes = [1, 256], strides = [1, 1]} : vector<1x352xf32> to vector<1x256xf32>
    %158 = vector.broadcast %152 : f32 to vector<1x256xf32>
    %159 = arith.mulf %158, %157 : vector<1x256xf32>
    %160 = arith.addf %140, %159 : vector<1x256xf32>
    %c36 = arith.constant 36 : index
    %161 = memref.load %arg2[%c36] : memref<98xf32, #tpu.memory_space<smem>>
    %c85 = arith.constant 85 : index
    %162 = memref.load %arg2[%c85] : memref<98xf32, #tpu.memory_space<smem>>
    %163 = vector.extract_strided_slice %109 {offsets = [0, 80], sizes = [1, 256], strides = [1, 1]} : vector<1x352xf32> to vector<1x256xf32>
    %164 = vector.broadcast %161 : f32 to vector<1x256xf32>
    %165 = arith.mulf %164, %163 : vector<1x256xf32>
    %166 = arith.addf %146, %165 : vector<1x256xf32>
    %167 = vector.extract_strided_slice %110 {offsets = [0, 80], sizes = [1, 256], strides = [1, 1]} : vector<1x352xf32> to vector<1x256xf32>
    %168 = vector.broadcast %162 : f32 to vector<1x256xf32>
    %169 = arith.mulf %168, %167 : vector<1x256xf32>
    %170 = arith.addf %150, %169 : vector<1x256xf32>
    %c43 = arith.constant 43 : index
    %171 = memref.load %arg2[%c43] : memref<98xf32, #tpu.memory_space<smem>>
    %c92 = arith.constant 92 : index
    %172 = memref.load %arg2[%c92] : memref<98xf32, #tpu.memory_space<smem>>
    %173 = vector.extract_strided_slice %109 {offsets = [0, 96], sizes = [1, 256], strides = [1, 1]} : vector<1x352xf32> to vector<1x256xf32>
    %174 = vector.broadcast %171 : f32 to vector<1x256xf32>
    %175 = arith.mulf %174, %173 : vector<1x256xf32>
    %176 = arith.addf %156, %175 : vector<1x256xf32>
    %177 = vector.extract_strided_slice %110 {offsets = [0, 96], sizes = [1, 256], strides = [1, 1]} : vector<1x352xf32> to vector<1x256xf32>
    %178 = vector.broadcast %172 : f32 to vector<1x256xf32>
    %179 = arith.mulf %178, %177 : vector<1x256xf32>
    %180 = arith.addf %160, %179 : vector<1x256xf32>
    %c2 = arith.constant 2 : index
    %c0_15 = arith.constant 0 : index
    %181 = vector.load %arg3[%c2, %c0_15] : memref<7x256xf32, #tpu.memory_space<vmem>>, vector<1x256xf32>
    %182 = vector.extract_strided_slice %21 {offsets = [0, 2], sizes = [1, 256], strides = [1, 1]} : vector<1x262xf32> to vector<1x256xf32>
    %183 = arith.mulf %182, %181 : vector<1x256xf32>
    %184 = vector.extract_strided_slice %22 {offsets = [0, 2], sizes = [1, 256], strides = [1, 1]} : vector<1x262xf32> to vector<1x256xf32>
    %185 = arith.mulf %184, %181 : vector<1x256xf32>
    %186 = tpu.concatenate %1, %183, %1 in 1 : vector<1x48xf32>, vector<1x256xf32>, vector<1x48xf32> -> vector<1x352xf32>
    %187 = tpu.concatenate %1, %185, %1 in 1 : vector<1x48xf32>, vector<1x256xf32>, vector<1x48xf32> -> vector<1x352xf32>
    %c2_16 = arith.constant 2 : index
    %188 = memref.load %arg2[%c2_16] : memref<98xf32, #tpu.memory_space<smem>>
    %c51 = arith.constant 51 : index
    %189 = memref.load %arg2[%c51] : memref<98xf32, #tpu.memory_space<smem>>
    %190 = vector.extract_strided_slice %186 {offsets = [0, 0], sizes = [1, 256], strides = [1, 1]} : vector<1x352xf32> to vector<1x256xf32>
    %191 = vector.broadcast %188 : f32 to vector<1x256xf32>
    %192 = arith.mulf %191, %190 : vector<1x256xf32>
    %193 = arith.addf %176, %192 : vector<1x256xf32>
    %194 = vector.extract_strided_slice %187 {offsets = [0, 0], sizes = [1, 256], strides = [1, 1]} : vector<1x352xf32> to vector<1x256xf32>
    %195 = vector.broadcast %189 : f32 to vector<1x256xf32>
    %196 = arith.mulf %195, %194 : vector<1x256xf32>
    %197 = arith.addf %180, %196 : vector<1x256xf32>
    %c9 = arith.constant 9 : index
    %198 = memref.load %arg2[%c9] : memref<98xf32, #tpu.memory_space<smem>>
    %c58 = arith.constant 58 : index
    %199 = memref.load %arg2[%c58] : memref<98xf32, #tpu.memory_space<smem>>
    %200 = vector.extract_strided_slice %186 {offsets = [0, 16], sizes = [1, 256], strides = [1, 1]} : vector<1x352xf32> to vector<1x256xf32>
    %201 = vector.broadcast %198 : f32 to vector<1x256xf32>
    %202 = arith.mulf %201, %200 : vector<1x256xf32>
    %203 = arith.addf %166, %202 : vector<1x256xf32>
    %204 = vector.extract_strided_slice %187 {offsets = [0, 16], sizes = [1, 256], strides = [1, 1]} : vector<1x352xf32> to vector<1x256xf32>
    %205 = vector.broadcast %199 : f32 to vector<1x256xf32>
    %206 = arith.mulf %205, %204 : vector<1x256xf32>
    %207 = arith.addf %170, %206 : vector<1x256xf32>
    %c16 = arith.constant 16 : index
    %208 = memref.load %arg2[%c16] : memref<98xf32, #tpu.memory_space<smem>>
    %c65 = arith.constant 65 : index
    %209 = memref.load %arg2[%c65] : memref<98xf32, #tpu.memory_space<smem>>
    %210 = vector.extract_strided_slice %186 {offsets = [0, 32], sizes = [1, 256], strides = [1, 1]} : vector<1x352xf32> to vector<1x256xf32>
    %211 = vector.broadcast %208 : f32 to vector<1x256xf32>
    %212 = arith.mulf %211, %210 : vector<1x256xf32>
    %213 = arith.addf %193, %212 : vector<1x256xf32>
    %214 = vector.extract_strided_slice %187 {offsets = [0, 32], sizes = [1, 256], strides = [1, 1]} : vector<1x352xf32> to vector<1x256xf32>
    %215 = vector.broadcast %209 : f32 to vector<1x256xf32>
    %216 = arith.mulf %215, %214 : vector<1x256xf32>
    %217 = arith.addf %197, %216 : vector<1x256xf32>
    %c23 = arith.constant 23 : index
    %218 = memref.load %arg2[%c23] : memref<98xf32, #tpu.memory_space<smem>>
    %c72 = arith.constant 72 : index
    %219 = memref.load %arg2[%c72] : memref<98xf32, #tpu.memory_space<smem>>
    %220 = vector.extract_strided_slice %186 {offsets = [0, 48], sizes = [1, 256], strides = [1, 1]} : vector<1x352xf32> to vector<1x256xf32>
    %221 = vector.broadcast %218 : f32 to vector<1x256xf32>
    %222 = arith.mulf %221, %220 : vector<1x256xf32>
    %223 = arith.addf %203, %222 : vector<1x256xf32>
    %224 = vector.extract_strided_slice %187 {offsets = [0, 48], sizes = [1, 256], strides = [1, 1]} : vector<1x352xf32> to vector<1x256xf32>
    %225 = vector.broadcast %219 : f32 to vector<1x256xf32>
    %226 = arith.mulf %225, %224 : vector<1x256xf32>
    %227 = arith.addf %207, %226 : vector<1x256xf32>
    %c30 = arith.constant 30 : index
    %228 = memref.load %arg2[%c30] : memref<98xf32, #tpu.memory_space<smem>>
    %c79 = arith.constant 79 : index
    %229 = memref.load %arg2[%c79] : memref<98xf32, #tpu.memory_space<smem>>
    %230 = vector.extract_strided_slice %186 {offsets = [0, 64], sizes = [1, 256], strides = [1, 1]} : vector<1x352xf32> to vector<1x256xf32>
    %231 = vector.broadcast %228 : f32 to vector<1x256xf32>
    %232 = arith.mulf %231, %230 : vector<1x256xf32>
    %233 = arith.addf %213, %232 : vector<1x256xf32>
    %234 = vector.extract_strided_slice %187 {offsets = [0, 64], sizes = [1, 256], strides = [1, 1]} : vector<1x352xf32> to vector<1x256xf32>
    %235 = vector.broadcast %229 : f32 to vector<1x256xf32>
    %236 = arith.mulf %235, %234 : vector<1x256xf32>
    %237 = arith.addf %217, %236 : vector<1x256xf32>
    %c37 = arith.constant 37 : index
    %238 = memref.load %arg2[%c37] : memref<98xf32, #tpu.memory_space<smem>>
    %c86 = arith.constant 86 : index
    %239 = memref.load %arg2[%c86] : memref<98xf32, #tpu.memory_space<smem>>
    %240 = vector.extract_strided_slice %186 {offsets = [0, 80], sizes = [1, 256], strides = [1, 1]} : vector<1x352xf32> to vector<1x256xf32>
    %241 = vector.broadcast %238 : f32 to vector<1x256xf32>
    %242 = arith.mulf %241, %240 : vector<1x256xf32>
    %243 = arith.addf %223, %242 : vector<1x256xf32>
    %244 = vector.extract_strided_slice %187 {offsets = [0, 80], sizes = [1, 256], strides = [1, 1]} : vector<1x352xf32> to vector<1x256xf32>
    %245 = vector.broadcast %239 : f32 to vector<1x256xf32>
    %246 = arith.mulf %245, %244 : vector<1x256xf32>
    %247 = arith.addf %227, %246 : vector<1x256xf32>
    %c44 = arith.constant 44 : index
    %248 = memref.load %arg2[%c44] : memref<98xf32, #tpu.memory_space<smem>>
    %c93 = arith.constant 93 : index
    %249 = memref.load %arg2[%c93] : memref<98xf32, #tpu.memory_space<smem>>
    %250 = vector.extract_strided_slice %186 {offsets = [0, 96], sizes = [1, 256], strides = [1, 1]} : vector<1x352xf32> to vector<1x256xf32>
    %251 = vector.broadcast %248 : f32 to vector<1x256xf32>
    %252 = arith.mulf %251, %250 : vector<1x256xf32>
    %253 = arith.addf %233, %252 : vector<1x256xf32>
    %254 = vector.extract_strided_slice %187 {offsets = [0, 96], sizes = [1, 256], strides = [1, 1]} : vector<1x352xf32> to vector<1x256xf32>
    %255 = vector.broadcast %249 : f32 to vector<1x256xf32>
    %256 = arith.mulf %255, %254 : vector<1x256xf32>
    %257 = arith.addf %237, %256 : vector<1x256xf32>
    %c3 = arith.constant 3 : index
    %c0_17 = arith.constant 0 : index
    %258 = vector.load %arg3[%c3, %c0_17] : memref<7x256xf32, #tpu.memory_space<vmem>>, vector<1x256xf32>
    %259 = vector.extract_strided_slice %21 {offsets = [0, 3], sizes = [1, 256], strides = [1, 1]} : vector<1x262xf32> to vector<1x256xf32>
    %260 = arith.mulf %259, %258 : vector<1x256xf32>
    %261 = vector.extract_strided_slice %22 {offsets = [0, 3], sizes = [1, 256], strides = [1, 1]} : vector<1x262xf32> to vector<1x256xf32>
    %262 = arith.mulf %261, %258 : vector<1x256xf32>
    %263 = tpu.concatenate %1, %260, %1 in 1 : vector<1x48xf32>, vector<1x256xf32>, vector<1x48xf32> -> vector<1x352xf32>
    %264 = tpu.concatenate %1, %262, %1 in 1 : vector<1x48xf32>, vector<1x256xf32>, vector<1x48xf32> -> vector<1x352xf32>
    %c3_18 = arith.constant 3 : index
    %265 = memref.load %arg2[%c3_18] : memref<98xf32, #tpu.memory_space<smem>>
    %c52 = arith.constant 52 : index
    %266 = memref.load %arg2[%c52] : memref<98xf32, #tpu.memory_space<smem>>
    %267 = vector.extract_strided_slice %263 {offsets = [0, 0], sizes = [1, 256], strides = [1, 1]} : vector<1x352xf32> to vector<1x256xf32>
    %268 = vector.broadcast %265 : f32 to vector<1x256xf32>
    %269 = arith.mulf %268, %267 : vector<1x256xf32>
    %270 = arith.addf %253, %269 : vector<1x256xf32>
    %271 = vector.extract_strided_slice %264 {offsets = [0, 0], sizes = [1, 256], strides = [1, 1]} : vector<1x352xf32> to vector<1x256xf32>
    %272 = vector.broadcast %266 : f32 to vector<1x256xf32>
    %273 = arith.mulf %272, %271 : vector<1x256xf32>
    %274 = arith.addf %257, %273 : vector<1x256xf32>
    %c10 = arith.constant 10 : index
    %275 = memref.load %arg2[%c10] : memref<98xf32, #tpu.memory_space<smem>>
    %c59 = arith.constant 59 : index
    %276 = memref.load %arg2[%c59] : memref<98xf32, #tpu.memory_space<smem>>
    %277 = vector.extract_strided_slice %263 {offsets = [0, 16], sizes = [1, 256], strides = [1, 1]} : vector<1x352xf32> to vector<1x256xf32>
    %278 = vector.broadcast %275 : f32 to vector<1x256xf32>
    %279 = arith.mulf %278, %277 : vector<1x256xf32>
    %280 = arith.addf %243, %279 : vector<1x256xf32>
    %281 = vector.extract_strided_slice %264 {offsets = [0, 16], sizes = [1, 256], strides = [1, 1]} : vector<1x352xf32> to vector<1x256xf32>
    %282 = vector.broadcast %276 : f32 to vector<1x256xf32>
    %283 = arith.mulf %282, %281 : vector<1x256xf32>
    %284 = arith.addf %247, %283 : vector<1x256xf32>
    %c17 = arith.constant 17 : index
    %285 = memref.load %arg2[%c17] : memref<98xf32, #tpu.memory_space<smem>>
    %c66 = arith.constant 66 : index
    %286 = memref.load %arg2[%c66] : memref<98xf32, #tpu.memory_space<smem>>
    %287 = vector.extract_strided_slice %263 {offsets = [0, 32], sizes = [1, 256], strides = [1, 1]} : vector<1x352xf32> to vector<1x256xf32>
    %288 = vector.broadcast %285 : f32 to vector<1x256xf32>
    %289 = arith.mulf %288, %287 : vector<1x256xf32>
    %290 = arith.addf %270, %289 : vector<1x256xf32>
    %291 = vector.extract_strided_slice %264 {offsets = [0, 32], sizes = [1, 256], strides = [1, 1]} : vector<1x352xf32> to vector<1x256xf32>
    %292 = vector.broadcast %286 : f32 to vector<1x256xf32>
    %293 = arith.mulf %292, %291 : vector<1x256xf32>
    %294 = arith.addf %274, %293 : vector<1x256xf32>
    %c24 = arith.constant 24 : index
    %295 = memref.load %arg2[%c24] : memref<98xf32, #tpu.memory_space<smem>>
    %c73 = arith.constant 73 : index
    %296 = memref.load %arg2[%c73] : memref<98xf32, #tpu.memory_space<smem>>
    %297 = vector.extract_strided_slice %263 {offsets = [0, 48], sizes = [1, 256], strides = [1, 1]} : vector<1x352xf32> to vector<1x256xf32>
    %298 = vector.broadcast %295 : f32 to vector<1x256xf32>
    %299 = arith.mulf %298, %297 : vector<1x256xf32>
    %300 = arith.addf %280, %299 : vector<1x256xf32>
    %301 = vector.extract_strided_slice %264 {offsets = [0, 48], sizes = [1, 256], strides = [1, 1]} : vector<1x352xf32> to vector<1x256xf32>
    %302 = vector.broadcast %296 : f32 to vector<1x256xf32>
    %303 = arith.mulf %302, %301 : vector<1x256xf32>
    %304 = arith.addf %284, %303 : vector<1x256xf32>
    %c31 = arith.constant 31 : index
    %305 = memref.load %arg2[%c31] : memref<98xf32, #tpu.memory_space<smem>>
    %c80 = arith.constant 80 : index
    %306 = memref.load %arg2[%c80] : memref<98xf32, #tpu.memory_space<smem>>
    %307 = vector.extract_strided_slice %263 {offsets = [0, 64], sizes = [1, 256], strides = [1, 1]} : vector<1x352xf32> to vector<1x256xf32>
    %308 = vector.broadcast %305 : f32 to vector<1x256xf32>
    %309 = arith.mulf %308, %307 : vector<1x256xf32>
    %310 = arith.addf %290, %309 : vector<1x256xf32>
    %311 = vector.extract_strided_slice %264 {offsets = [0, 64], sizes = [1, 256], strides = [1, 1]} : vector<1x352xf32> to vector<1x256xf32>
    %312 = vector.broadcast %306 : f32 to vector<1x256xf32>
    %313 = arith.mulf %312, %311 : vector<1x256xf32>
    %314 = arith.addf %294, %313 : vector<1x256xf32>
    %c38 = arith.constant 38 : index
    %315 = memref.load %arg2[%c38] : memref<98xf32, #tpu.memory_space<smem>>
    %c87 = arith.constant 87 : index
    %316 = memref.load %arg2[%c87] : memref<98xf32, #tpu.memory_space<smem>>
    %317 = vector.extract_strided_slice %263 {offsets = [0, 80], sizes = [1, 256], strides = [1, 1]} : vector<1x352xf32> to vector<1x256xf32>
    %318 = vector.broadcast %315 : f32 to vector<1x256xf32>
    %319 = arith.mulf %318, %317 : vector<1x256xf32>
    %320 = arith.addf %300, %319 : vector<1x256xf32>
    %321 = vector.extract_strided_slice %264 {offsets = [0, 80], sizes = [1, 256], strides = [1, 1]} : vector<1x352xf32> to vector<1x256xf32>
    %322 = vector.broadcast %316 : f32 to vector<1x256xf32>
    %323 = arith.mulf %322, %321 : vector<1x256xf32>
    %324 = arith.addf %304, %323 : vector<1x256xf32>
    %c45 = arith.constant 45 : index
    %325 = memref.load %arg2[%c45] : memref<98xf32, #tpu.memory_space<smem>>
    %c94 = arith.constant 94 : index
    %326 = memref.load %arg2[%c94] : memref<98xf32, #tpu.memory_space<smem>>
    %327 = vector.extract_strided_slice %263 {offsets = [0, 96], sizes = [1, 256], strides = [1, 1]} : vector<1x352xf32> to vector<1x256xf32>
    %328 = vector.broadcast %325 : f32 to vector<1x256xf32>
    %329 = arith.mulf %328, %327 : vector<1x256xf32>
    %330 = arith.addf %310, %329 : vector<1x256xf32>
    %331 = vector.extract_strided_slice %264 {offsets = [0, 96], sizes = [1, 256], strides = [1, 1]} : vector<1x352xf32> to vector<1x256xf32>
    %332 = vector.broadcast %326 : f32 to vector<1x256xf32>
    %333 = arith.mulf %332, %331 : vector<1x256xf32>
    %334 = arith.addf %314, %333 : vector<1x256xf32>
    %c4 = arith.constant 4 : index
    %c0_19 = arith.constant 0 : index
    %335 = vector.load %arg3[%c4, %c0_19] : memref<7x256xf32, #tpu.memory_space<vmem>>, vector<1x256xf32>
    %336 = vector.extract_strided_slice %21 {offsets = [0, 4], sizes = [1, 256], strides = [1, 1]} : vector<1x262xf32> to vector<1x256xf32>
    %337 = arith.mulf %336, %335 : vector<1x256xf32>
    %338 = vector.extract_strided_slice %22 {offsets = [0, 4], sizes = [1, 256], strides = [1, 1]} : vector<1x262xf32> to vector<1x256xf32>
    %339 = arith.mulf %338, %335 : vector<1x256xf32>
    %340 = tpu.concatenate %1, %337, %1 in 1 : vector<1x48xf32>, vector<1x256xf32>, vector<1x48xf32> -> vector<1x352xf32>
    %341 = tpu.concatenate %1, %339, %1 in 1 : vector<1x48xf32>, vector<1x256xf32>, vector<1x48xf32> -> vector<1x352xf32>
    %c4_20 = arith.constant 4 : index
    %342 = memref.load %arg2[%c4_20] : memref<98xf32, #tpu.memory_space<smem>>
    %c53 = arith.constant 53 : index
    %343 = memref.load %arg2[%c53] : memref<98xf32, #tpu.memory_space<smem>>
    %344 = vector.extract_strided_slice %340 {offsets = [0, 0], sizes = [1, 256], strides = [1, 1]} : vector<1x352xf32> to vector<1x256xf32>
    %345 = vector.broadcast %342 : f32 to vector<1x256xf32>
    %346 = arith.mulf %345, %344 : vector<1x256xf32>
    %347 = arith.addf %330, %346 : vector<1x256xf32>
    %348 = vector.extract_strided_slice %341 {offsets = [0, 0], sizes = [1, 256], strides = [1, 1]} : vector<1x352xf32> to vector<1x256xf32>
    %349 = vector.broadcast %343 : f32 to vector<1x256xf32>
    %350 = arith.mulf %349, %348 : vector<1x256xf32>
    %351 = arith.addf %334, %350 : vector<1x256xf32>
    %c11 = arith.constant 11 : index
    %352 = memref.load %arg2[%c11] : memref<98xf32, #tpu.memory_space<smem>>
    %c60 = arith.constant 60 : index
    %353 = memref.load %arg2[%c60] : memref<98xf32, #tpu.memory_space<smem>>
    %354 = vector.extract_strided_slice %340 {offsets = [0, 16], sizes = [1, 256], strides = [1, 1]} : vector<1x352xf32> to vector<1x256xf32>
    %355 = vector.broadcast %352 : f32 to vector<1x256xf32>
    %356 = arith.mulf %355, %354 : vector<1x256xf32>
    %357 = arith.addf %320, %356 : vector<1x256xf32>
    %358 = vector.extract_strided_slice %341 {offsets = [0, 16], sizes = [1, 256], strides = [1, 1]} : vector<1x352xf32> to vector<1x256xf32>
    %359 = vector.broadcast %353 : f32 to vector<1x256xf32>
    %360 = arith.mulf %359, %358 : vector<1x256xf32>
    %361 = arith.addf %324, %360 : vector<1x256xf32>
    %c18 = arith.constant 18 : index
    %362 = memref.load %arg2[%c18] : memref<98xf32, #tpu.memory_space<smem>>
    %c67 = arith.constant 67 : index
    %363 = memref.load %arg2[%c67] : memref<98xf32, #tpu.memory_space<smem>>
    %364 = vector.extract_strided_slice %340 {offsets = [0, 32], sizes = [1, 256], strides = [1, 1]} : vector<1x352xf32> to vector<1x256xf32>
    %365 = vector.broadcast %362 : f32 to vector<1x256xf32>
    %366 = arith.mulf %365, %364 : vector<1x256xf32>
    %367 = arith.addf %347, %366 : vector<1x256xf32>
    %368 = vector.extract_strided_slice %341 {offsets = [0, 32], sizes = [1, 256], strides = [1, 1]} : vector<1x352xf32> to vector<1x256xf32>
    %369 = vector.broadcast %363 : f32 to vector<1x256xf32>
    %370 = arith.mulf %369, %368 : vector<1x256xf32>
    %371 = arith.addf %351, %370 : vector<1x256xf32>
    %c25 = arith.constant 25 : index
    %372 = memref.load %arg2[%c25] : memref<98xf32, #tpu.memory_space<smem>>
    %c74 = arith.constant 74 : index
    %373 = memref.load %arg2[%c74] : memref<98xf32, #tpu.memory_space<smem>>
    %374 = vector.extract_strided_slice %340 {offsets = [0, 48], sizes = [1, 256], strides = [1, 1]} : vector<1x352xf32> to vector<1x256xf32>
    %375 = vector.broadcast %372 : f32 to vector<1x256xf32>
    %376 = arith.mulf %375, %374 : vector<1x256xf32>
    %377 = arith.addf %357, %376 : vector<1x256xf32>
    %378 = vector.extract_strided_slice %341 {offsets = [0, 48], sizes = [1, 256], strides = [1, 1]} : vector<1x352xf32> to vector<1x256xf32>
    %379 = vector.broadcast %373 : f32 to vector<1x256xf32>
    %380 = arith.mulf %379, %378 : vector<1x256xf32>
    %381 = arith.addf %361, %380 : vector<1x256xf32>
    %c32 = arith.constant 32 : index
    %382 = memref.load %arg2[%c32] : memref<98xf32, #tpu.memory_space<smem>>
    %c81 = arith.constant 81 : index
    %383 = memref.load %arg2[%c81] : memref<98xf32, #tpu.memory_space<smem>>
    %384 = vector.extract_strided_slice %340 {offsets = [0, 64], sizes = [1, 256], strides = [1, 1]} : vector<1x352xf32> to vector<1x256xf32>
    %385 = vector.broadcast %382 : f32 to vector<1x256xf32>
    %386 = arith.mulf %385, %384 : vector<1x256xf32>
    %387 = arith.addf %367, %386 : vector<1x256xf32>
    %388 = vector.extract_strided_slice %341 {offsets = [0, 64], sizes = [1, 256], strides = [1, 1]} : vector<1x352xf32> to vector<1x256xf32>
    %389 = vector.broadcast %383 : f32 to vector<1x256xf32>
    %390 = arith.mulf %389, %388 : vector<1x256xf32>
    %391 = arith.addf %371, %390 : vector<1x256xf32>
    %c39 = arith.constant 39 : index
    %392 = memref.load %arg2[%c39] : memref<98xf32, #tpu.memory_space<smem>>
    %c88 = arith.constant 88 : index
    %393 = memref.load %arg2[%c88] : memref<98xf32, #tpu.memory_space<smem>>
    %394 = vector.extract_strided_slice %340 {offsets = [0, 80], sizes = [1, 256], strides = [1, 1]} : vector<1x352xf32> to vector<1x256xf32>
    %395 = vector.broadcast %392 : f32 to vector<1x256xf32>
    %396 = arith.mulf %395, %394 : vector<1x256xf32>
    %397 = arith.addf %377, %396 : vector<1x256xf32>
    %398 = vector.extract_strided_slice %341 {offsets = [0, 80], sizes = [1, 256], strides = [1, 1]} : vector<1x352xf32> to vector<1x256xf32>
    %399 = vector.broadcast %393 : f32 to vector<1x256xf32>
    %400 = arith.mulf %399, %398 : vector<1x256xf32>
    %401 = arith.addf %381, %400 : vector<1x256xf32>
    %c46 = arith.constant 46 : index
    %402 = memref.load %arg2[%c46] : memref<98xf32, #tpu.memory_space<smem>>
    %c95 = arith.constant 95 : index
    %403 = memref.load %arg2[%c95] : memref<98xf32, #tpu.memory_space<smem>>
    %404 = vector.extract_strided_slice %340 {offsets = [0, 96], sizes = [1, 256], strides = [1, 1]} : vector<1x352xf32> to vector<1x256xf32>
    %405 = vector.broadcast %402 : f32 to vector<1x256xf32>
    %406 = arith.mulf %405, %404 : vector<1x256xf32>
    %407 = arith.addf %387, %406 : vector<1x256xf32>
    %408 = vector.extract_strided_slice %341 {offsets = [0, 96], sizes = [1, 256], strides = [1, 1]} : vector<1x352xf32> to vector<1x256xf32>
    %409 = vector.broadcast %403 : f32 to vector<1x256xf32>
    %410 = arith.mulf %409, %408 : vector<1x256xf32>
    %411 = arith.addf %391, %410 : vector<1x256xf32>
    %c5 = arith.constant 5 : index
    %c0_21 = arith.constant 0 : index
    %412 = vector.load %arg3[%c5, %c0_21] : memref<7x256xf32, #tpu.memory_space<vmem>>, vector<1x256xf32>
    %413 = vector.extract_strided_slice %21 {offsets = [0, 5], sizes = [1, 256], strides = [1, 1]} : vector<1x262xf32> to vector<1x256xf32>
    %414 = arith.mulf %413, %412 : vector<1x256xf32>
    %415 = vector.extract_strided_slice %22 {offsets = [0, 5], sizes = [1, 256], strides = [1, 1]} : vector<1x262xf32> to vector<1x256xf32>
    %416 = arith.mulf %415, %412 : vector<1x256xf32>
    %417 = tpu.concatenate %1, %414, %1 in 1 : vector<1x48xf32>, vector<1x256xf32>, vector<1x48xf32> -> vector<1x352xf32>
    %418 = tpu.concatenate %1, %416, %1 in 1 : vector<1x48xf32>, vector<1x256xf32>, vector<1x48xf32> -> vector<1x352xf32>
    %c5_22 = arith.constant 5 : index
    %419 = memref.load %arg2[%c5_22] : memref<98xf32, #tpu.memory_space<smem>>
    %c54 = arith.constant 54 : index
    %420 = memref.load %arg2[%c54] : memref<98xf32, #tpu.memory_space<smem>>
    %421 = vector.extract_strided_slice %417 {offsets = [0, 0], sizes = [1, 256], strides = [1, 1]} : vector<1x352xf32> to vector<1x256xf32>
    %422 = vector.broadcast %419 : f32 to vector<1x256xf32>
    %423 = arith.mulf %422, %421 : vector<1x256xf32>
    %424 = arith.addf %407, %423 : vector<1x256xf32>
    %425 = vector.extract_strided_slice %418 {offsets = [0, 0], sizes = [1, 256], strides = [1, 1]} : vector<1x352xf32> to vector<1x256xf32>
    %426 = vector.broadcast %420 : f32 to vector<1x256xf32>
    %427 = arith.mulf %426, %425 : vector<1x256xf32>
    %428 = arith.addf %411, %427 : vector<1x256xf32>
    %c12 = arith.constant 12 : index
    %429 = memref.load %arg2[%c12] : memref<98xf32, #tpu.memory_space<smem>>
    %c61 = arith.constant 61 : index
    %430 = memref.load %arg2[%c61] : memref<98xf32, #tpu.memory_space<smem>>
    %431 = vector.extract_strided_slice %417 {offsets = [0, 16], sizes = [1, 256], strides = [1, 1]} : vector<1x352xf32> to vector<1x256xf32>
    %432 = vector.broadcast %429 : f32 to vector<1x256xf32>
    %433 = arith.mulf %432, %431 : vector<1x256xf32>
    %434 = arith.addf %397, %433 : vector<1x256xf32>
    %435 = vector.extract_strided_slice %418 {offsets = [0, 16], sizes = [1, 256], strides = [1, 1]} : vector<1x352xf32> to vector<1x256xf32>
    %436 = vector.broadcast %430 : f32 to vector<1x256xf32>
    %437 = arith.mulf %436, %435 : vector<1x256xf32>
    %438 = arith.addf %401, %437 : vector<1x256xf32>
    %c19 = arith.constant 19 : index
    %439 = memref.load %arg2[%c19] : memref<98xf32, #tpu.memory_space<smem>>
    %c68 = arith.constant 68 : index
    %440 = memref.load %arg2[%c68] : memref<98xf32, #tpu.memory_space<smem>>
    %441 = vector.extract_strided_slice %417 {offsets = [0, 32], sizes = [1, 256], strides = [1, 1]} : vector<1x352xf32> to vector<1x256xf32>
    %442 = vector.broadcast %439 : f32 to vector<1x256xf32>
    %443 = arith.mulf %442, %441 : vector<1x256xf32>
    %444 = arith.addf %424, %443 : vector<1x256xf32>
    %445 = vector.extract_strided_slice %418 {offsets = [0, 32], sizes = [1, 256], strides = [1, 1]} : vector<1x352xf32> to vector<1x256xf32>
    %446 = vector.broadcast %440 : f32 to vector<1x256xf32>
    %447 = arith.mulf %446, %445 : vector<1x256xf32>
    %448 = arith.addf %428, %447 : vector<1x256xf32>
    %c26 = arith.constant 26 : index
    %449 = memref.load %arg2[%c26] : memref<98xf32, #tpu.memory_space<smem>>
    %c75 = arith.constant 75 : index
    %450 = memref.load %arg2[%c75] : memref<98xf32, #tpu.memory_space<smem>>
    %451 = vector.extract_strided_slice %417 {offsets = [0, 48], sizes = [1, 256], strides = [1, 1]} : vector<1x352xf32> to vector<1x256xf32>
    %452 = vector.broadcast %449 : f32 to vector<1x256xf32>
    %453 = arith.mulf %452, %451 : vector<1x256xf32>
    %454 = arith.addf %434, %453 : vector<1x256xf32>
    %455 = vector.extract_strided_slice %418 {offsets = [0, 48], sizes = [1, 256], strides = [1, 1]} : vector<1x352xf32> to vector<1x256xf32>
    %456 = vector.broadcast %450 : f32 to vector<1x256xf32>
    %457 = arith.mulf %456, %455 : vector<1x256xf32>
    %458 = arith.addf %438, %457 : vector<1x256xf32>
    %c33 = arith.constant 33 : index
    %459 = memref.load %arg2[%c33] : memref<98xf32, #tpu.memory_space<smem>>
    %c82 = arith.constant 82 : index
    %460 = memref.load %arg2[%c82] : memref<98xf32, #tpu.memory_space<smem>>
    %461 = vector.extract_strided_slice %417 {offsets = [0, 64], sizes = [1, 256], strides = [1, 1]} : vector<1x352xf32> to vector<1x256xf32>
    %462 = vector.broadcast %459 : f32 to vector<1x256xf32>
    %463 = arith.mulf %462, %461 : vector<1x256xf32>
    %464 = arith.addf %444, %463 : vector<1x256xf32>
    %465 = vector.extract_strided_slice %418 {offsets = [0, 64], sizes = [1, 256], strides = [1, 1]} : vector<1x352xf32> to vector<1x256xf32>
    %466 = vector.broadcast %460 : f32 to vector<1x256xf32>
    %467 = arith.mulf %466, %465 : vector<1x256xf32>
    %468 = arith.addf %448, %467 : vector<1x256xf32>
    %c40 = arith.constant 40 : index
    %469 = memref.load %arg2[%c40] : memref<98xf32, #tpu.memory_space<smem>>
    %c89 = arith.constant 89 : index
    %470 = memref.load %arg2[%c89] : memref<98xf32, #tpu.memory_space<smem>>
    %471 = vector.extract_strided_slice %417 {offsets = [0, 80], sizes = [1, 256], strides = [1, 1]} : vector<1x352xf32> to vector<1x256xf32>
    %472 = vector.broadcast %469 : f32 to vector<1x256xf32>
    %473 = arith.mulf %472, %471 : vector<1x256xf32>
    %474 = arith.addf %454, %473 : vector<1x256xf32>
    %475 = vector.extract_strided_slice %418 {offsets = [0, 80], sizes = [1, 256], strides = [1, 1]} : vector<1x352xf32> to vector<1x256xf32>
    %476 = vector.broadcast %470 : f32 to vector<1x256xf32>
    %477 = arith.mulf %476, %475 : vector<1x256xf32>
    %478 = arith.addf %458, %477 : vector<1x256xf32>
    %c47 = arith.constant 47 : index
    %479 = memref.load %arg2[%c47] : memref<98xf32, #tpu.memory_space<smem>>
    %c96 = arith.constant 96 : index
    %480 = memref.load %arg2[%c96] : memref<98xf32, #tpu.memory_space<smem>>
    %481 = vector.extract_strided_slice %417 {offsets = [0, 96], sizes = [1, 256], strides = [1, 1]} : vector<1x352xf32> to vector<1x256xf32>
    %482 = vector.broadcast %479 : f32 to vector<1x256xf32>
    %483 = arith.mulf %482, %481 : vector<1x256xf32>
    %484 = arith.addf %464, %483 : vector<1x256xf32>
    %485 = vector.extract_strided_slice %418 {offsets = [0, 96], sizes = [1, 256], strides = [1, 1]} : vector<1x352xf32> to vector<1x256xf32>
    %486 = vector.broadcast %480 : f32 to vector<1x256xf32>
    %487 = arith.mulf %486, %485 : vector<1x256xf32>
    %488 = arith.addf %468, %487 : vector<1x256xf32>
    %c6 = arith.constant 6 : index
    %c0_23 = arith.constant 0 : index
    %489 = vector.load %arg3[%c6, %c0_23] : memref<7x256xf32, #tpu.memory_space<vmem>>, vector<1x256xf32>
    %490 = vector.extract_strided_slice %21 {offsets = [0, 6], sizes = [1, 256], strides = [1, 1]} : vector<1x262xf32> to vector<1x256xf32>
    %491 = arith.mulf %490, %489 : vector<1x256xf32>
    %492 = vector.extract_strided_slice %22 {offsets = [0, 6], sizes = [1, 256], strides = [1, 1]} : vector<1x262xf32> to vector<1x256xf32>
    %493 = arith.mulf %492, %489 : vector<1x256xf32>
    %494 = tpu.concatenate %1, %491, %1 in 1 : vector<1x48xf32>, vector<1x256xf32>, vector<1x48xf32> -> vector<1x352xf32>
    %495 = tpu.concatenate %1, %493, %1 in 1 : vector<1x48xf32>, vector<1x256xf32>, vector<1x48xf32> -> vector<1x352xf32>
    %c6_24 = arith.constant 6 : index
    %496 = memref.load %arg2[%c6_24] : memref<98xf32, #tpu.memory_space<smem>>
    %c55 = arith.constant 55 : index
    %497 = memref.load %arg2[%c55] : memref<98xf32, #tpu.memory_space<smem>>
    %498 = vector.extract_strided_slice %494 {offsets = [0, 0], sizes = [1, 256], strides = [1, 1]} : vector<1x352xf32> to vector<1x256xf32>
    %499 = vector.broadcast %496 : f32 to vector<1x256xf32>
    %500 = arith.mulf %499, %498 : vector<1x256xf32>
    %501 = arith.addf %484, %500 : vector<1x256xf32>
    %502 = vector.extract_strided_slice %495 {offsets = [0, 0], sizes = [1, 256], strides = [1, 1]} : vector<1x352xf32> to vector<1x256xf32>
    %503 = vector.broadcast %497 : f32 to vector<1x256xf32>
    %504 = arith.mulf %503, %502 : vector<1x256xf32>
    %505 = arith.addf %488, %504 : vector<1x256xf32>
    %c13 = arith.constant 13 : index
    %506 = memref.load %arg2[%c13] : memref<98xf32, #tpu.memory_space<smem>>
    %c62 = arith.constant 62 : index
    %507 = memref.load %arg2[%c62] : memref<98xf32, #tpu.memory_space<smem>>
    %508 = vector.extract_strided_slice %494 {offsets = [0, 16], sizes = [1, 256], strides = [1, 1]} : vector<1x352xf32> to vector<1x256xf32>
    %509 = vector.broadcast %506 : f32 to vector<1x256xf32>
    %510 = arith.mulf %509, %508 : vector<1x256xf32>
    %511 = arith.addf %474, %510 : vector<1x256xf32>
    %512 = vector.extract_strided_slice %495 {offsets = [0, 16], sizes = [1, 256], strides = [1, 1]} : vector<1x352xf32> to vector<1x256xf32>
    %513 = vector.broadcast %507 : f32 to vector<1x256xf32>
    %514 = arith.mulf %513, %512 : vector<1x256xf32>
    %515 = arith.addf %478, %514 : vector<1x256xf32>
    %c20 = arith.constant 20 : index
    %516 = memref.load %arg2[%c20] : memref<98xf32, #tpu.memory_space<smem>>
    %c69 = arith.constant 69 : index
    %517 = memref.load %arg2[%c69] : memref<98xf32, #tpu.memory_space<smem>>
    %518 = vector.extract_strided_slice %494 {offsets = [0, 32], sizes = [1, 256], strides = [1, 1]} : vector<1x352xf32> to vector<1x256xf32>
    %519 = vector.broadcast %516 : f32 to vector<1x256xf32>
    %520 = arith.mulf %519, %518 : vector<1x256xf32>
    %521 = arith.addf %501, %520 : vector<1x256xf32>
    %522 = vector.extract_strided_slice %495 {offsets = [0, 32], sizes = [1, 256], strides = [1, 1]} : vector<1x352xf32> to vector<1x256xf32>
    %523 = vector.broadcast %517 : f32 to vector<1x256xf32>
    %524 = arith.mulf %523, %522 : vector<1x256xf32>
    %525 = arith.addf %505, %524 : vector<1x256xf32>
    %c27 = arith.constant 27 : index
    %526 = memref.load %arg2[%c27] : memref<98xf32, #tpu.memory_space<smem>>
    %c76 = arith.constant 76 : index
    %527 = memref.load %arg2[%c76] : memref<98xf32, #tpu.memory_space<smem>>
    %528 = vector.extract_strided_slice %494 {offsets = [0, 48], sizes = [1, 256], strides = [1, 1]} : vector<1x352xf32> to vector<1x256xf32>
    %529 = vector.broadcast %526 : f32 to vector<1x256xf32>
    %530 = arith.mulf %529, %528 : vector<1x256xf32>
    %531 = arith.addf %511, %530 : vector<1x256xf32>
    %532 = vector.extract_strided_slice %495 {offsets = [0, 48], sizes = [1, 256], strides = [1, 1]} : vector<1x352xf32> to vector<1x256xf32>
    %533 = vector.broadcast %527 : f32 to vector<1x256xf32>
    %534 = arith.mulf %533, %532 : vector<1x256xf32>
    %535 = arith.addf %515, %534 : vector<1x256xf32>
    %c34 = arith.constant 34 : index
    %536 = memref.load %arg2[%c34] : memref<98xf32, #tpu.memory_space<smem>>
    %c83 = arith.constant 83 : index
    %537 = memref.load %arg2[%c83] : memref<98xf32, #tpu.memory_space<smem>>
    %538 = vector.extract_strided_slice %494 {offsets = [0, 64], sizes = [1, 256], strides = [1, 1]} : vector<1x352xf32> to vector<1x256xf32>
    %539 = vector.broadcast %536 : f32 to vector<1x256xf32>
    %540 = arith.mulf %539, %538 : vector<1x256xf32>
    %541 = arith.addf %521, %540 : vector<1x256xf32>
    %542 = vector.extract_strided_slice %495 {offsets = [0, 64], sizes = [1, 256], strides = [1, 1]} : vector<1x352xf32> to vector<1x256xf32>
    %543 = vector.broadcast %537 : f32 to vector<1x256xf32>
    %544 = arith.mulf %543, %542 : vector<1x256xf32>
    %545 = arith.addf %525, %544 : vector<1x256xf32>
    %c41 = arith.constant 41 : index
    %546 = memref.load %arg2[%c41] : memref<98xf32, #tpu.memory_space<smem>>
    %c90 = arith.constant 90 : index
    %547 = memref.load %arg2[%c90] : memref<98xf32, #tpu.memory_space<smem>>
    %548 = vector.extract_strided_slice %494 {offsets = [0, 80], sizes = [1, 256], strides = [1, 1]} : vector<1x352xf32> to vector<1x256xf32>
    %549 = vector.broadcast %546 : f32 to vector<1x256xf32>
    %550 = arith.mulf %549, %548 : vector<1x256xf32>
    %551 = arith.addf %531, %550 : vector<1x256xf32>
    %552 = vector.extract_strided_slice %495 {offsets = [0, 80], sizes = [1, 256], strides = [1, 1]} : vector<1x352xf32> to vector<1x256xf32>
    %553 = vector.broadcast %547 : f32 to vector<1x256xf32>
    %554 = arith.mulf %553, %552 : vector<1x256xf32>
    %555 = arith.addf %535, %554 : vector<1x256xf32>
    %c48 = arith.constant 48 : index
    %556 = memref.load %arg2[%c48] : memref<98xf32, #tpu.memory_space<smem>>
    %c97 = arith.constant 97 : index
    %557 = memref.load %arg2[%c97] : memref<98xf32, #tpu.memory_space<smem>>
    %558 = vector.extract_strided_slice %494 {offsets = [0, 96], sizes = [1, 256], strides = [1, 1]} : vector<1x352xf32> to vector<1x256xf32>
    %559 = vector.broadcast %556 : f32 to vector<1x256xf32>
    %560 = arith.mulf %559, %558 : vector<1x256xf32>
    %561 = arith.addf %541, %560 : vector<1x256xf32>
    %562 = vector.extract_strided_slice %495 {offsets = [0, 96], sizes = [1, 256], strides = [1, 1]} : vector<1x352xf32> to vector<1x256xf32>
    %563 = vector.broadcast %557 : f32 to vector<1x256xf32>
    %564 = arith.mulf %563, %562 : vector<1x256xf32>
    %565 = arith.addf %545, %564 : vector<1x256xf32>
    %566 = arith.addf %561, %551 : vector<1x256xf32>
    %567 = arith.addf %565, %555 : vector<1x256xf32>
    %568 = arith.addf %566, %567 : vector<1x256xf32>
    %cst_25 = arith.constant 0.000000e+00 : f32
    %569 = vector.broadcast %cst_25 : f32 to vector<1x256xf32>
    %570 = arith.subf %569, %568 : vector<1x256xf32>
    %571 = math.exp %570 : vector<1x256xf32>
    %cst_26 = arith.constant 1.000000e+00 : f32
    %572 = vector.broadcast %cst_26 : f32 to vector<1x256xf32>
    %573 = arith.addf %572, %571 : vector<1x256xf32>
    %574 = tpu.reciprocal %573 : vector<1x256xf32> -> vector<1x256xf32>
    %575 = vector.broadcast %574 : vector<1x256xf32> to vector<4x256xf32>
    %576 = arith.mulf %3, %575 : vector<4x256xf32>
    %c0_27 = arith.constant 0 : index
    %c0_28 = arith.constant 0 : index
    %c0_29 = arith.constant 0 : index
    %577 = vector.load %arg4[%c0_27, %c0_28, %c0_29] : memref<1x4x256xf32, #tpu.memory_space<vmem>>, vector<1x4x256xf32>
    %578 = vector.shape_cast %577 : vector<1x4x256xf32> to vector<4x256xf32>
    %579 = vector.shape_cast %576 : vector<4x256xf32> to vector<1x4x256xf32>
    tpu.vector_store %arg4[%c0_27, %c0_28, %c0_29], %579 {strides = array<i32>} : memref<1x4x256xf32, #tpu.memory_space<vmem>>, vector<1x4x256xf32>,
    return
  }
  func.func @transform_0(%arg0: i32) -> (i32, i32, i32) {
    %c0_i32 = arith.constant 0 : i32
    %c0_i32_0 = arith.constant 0 : i32
    %c0_i32_1 = arith.constant 0 : i32
    return %arg0, %c0_i32, %c0_i32_0 : i32, i32, i32
  }
  func.func @transform_1(%arg0: i32) -> i32 {
    %c0_i32 = arith.constant 0 : i32
    %c0_i32_0 = arith.constant 0 : i32
    return %c0_i32 : i32
  }
  func.func @transform_2(%arg0: i32) -> (i32, i32) {
    %c0_i32 = arith.constant 0 : i32
    %c0_i32_0 = arith.constant 0 : i32
    %c0_i32_1 = arith.constant 0 : i32
    return %c0_i32, %c0_i32_0 : i32, i32
  }
  func.func @transform_3(%arg0: i32) -> (i32, i32, i32) {
    %c0_i32 = arith.constant 0 : i32
    %c0_i32_0 = arith.constant 0 : i32
    %c0_i32_1 = arith.constant 0 : i32
    return %arg0, %c0_i32, %c0_i32_0 : i32, i32, i32
  }
}

</mosaic_0001>

<llo_original>
// kernel: tpu_custom_call.1
$region0: #{tpu_custom_call.1}
  #allocation0 [shape = 'u32[]', space=smem, size = 0x4, offset = 0x4, fixed_abs, tag = 'smem constant byte address 0x4 - core index']
  #allocation1 [shape = 'u32[72,128]{1,0:T(1,128)}', space=vmem, size = 0x9000, scoped, tag = 'internal scratch']
  %s0 = inlined_call_operand.hbm [shape: f32[2,4,256], index: 0, kind: input, shape index: {}]
  %s1 = inlined_call_operand.hbm [shape: f32[98], index: 1, kind: input, shape index: {}]
  %s2 = inlined_call_operand.hbm [shape: f32[7,256], index: 2, kind: input, shape index: {}]
  %s3 = inlined_call_operand.hbm [shape: f32[2,4,256], index: 3, kind: output, shape index: {}]
  %s4 = sld [smem:[#allocation0]]
  $region57: #{tpu_custom_call.1} parent=0
    _
  %s6 = ssub.s32 1, %s4
  %s7 = scalar_select 0, %s6, %s4
  $region1: #{tpu_custom_call.1} parent=0
    #allocation2 [shape = 'u8[8192]{0}', space=vmem, size = 0x2000, scoped, tag = 'input window, operand 0']
    #allocation3 [shape = 's32[2]{0}', space=sflag, size = 0x8, scoped, tag = 'scoped memory for tpu_custom_call.1']
    #allocation4 [shape = 's32[2]{0}', space=sflag, size = 0x8, scoped, tag = 'scoped memory for tpu_custom_call.1']
    #allocation5 [shape = 's32[2]{0}', space=sflag, size = 0x8, scoped, tag = 'scoped memory for tpu_custom_call.1']
    #allocation6 [shape = 'u8[512]{0}', space=smem, size = 0x200, scoped, tag = 'input window, operand 1, single buffered']
    #allocation7 [shape = 'u8[8192]{0}', space=vmem, size = 0x2000, scoped, tag = 'input window, operand 2, single buffered']
    #allocation8 [shape = 's32[1]{0}', space=sflag, size = 0x4, scoped, tag = 'scoped memory for tpu_custom_call.1']
    #allocation9 [shape = 'u8[8192]{0}', space=vmem, size = 0x2000, scoped, tag = 'output window, operand 0']
    %8 = vsyncpa [#allocation3], 0
    %s9 = scalar_lea.sflag [#allocation3], 1
    %10 = vsyncpa %s9, 0
    %11 = vsyncpa [#allocation5], 0
    %12 = vsyncpa [#allocation8], 0
    %13 = vsyncpa [#allocation4], 0
    %s14 = scalar_lea.sflag [#allocation4], 1
    %15 = vsyncpa %s14, 0
    loop: start=0, step=1, limit=4
    $region2: #{tpu_custom_call.1} parent=1 // loop_pre_header
      _
    $region3: #{tpu_custom_call.1} parent=1 // loop_header
      %s17 = sphi 0, %s21
      %p18 = scmp.ge.s32.totalorder %s17, 4
      %s27 = sphi 0, %s29
      %s30 = sphi 0, %s27
      %s31 = sphi 0, %s30
      %s47 = sphi 0, %s31
      %s51 = sphi 0, %s51
      %s53 = sphi 0, %s51
      %s54 = sphi 0, %s53
      %s68 = sphi 0, %s54
      %s72 = sphi 0, %s72
      %s74 = sphi 0, %s72
      %s75 = sphi 0, %s74
      %s89 = sphi 0, %s75
      %s95 = sphi 0, %s97
      %s98 = sphi 0, %s95
      %s99 = sphi 0, %s98
      %s115 = sphi 0, %s99
    $region4: #{tpu_custom_call.1} parent=1 // loop_header_branch
      %20 = sbr.rel (%p18) target = $region8
    $region5: #{tpu_custom_call.1} parent=1 // loop_body
      %s22 = ssub.s32 %s17, 1
      %s23 = ssub.s32 %s17, 2
      %s24 = sadd.s32 %s17, 1
      %s25 = ssub.s32 %s17, %s24
      %p26 = scmp.eq.s32.totalorder %s25, 0
      %s28 = sadd.s32 %s27, 1
      %s29 = scalar_select %p26, %s27, %s28
      %p32 = pneg %p26
      %p33 = scmp.eq.s32.totalorder %s17, 1
      %p34 = por %p32, %p33
      %p35 = scmp.ne.s32.totalorder %s27, %s30
      %p36 = scmp.eq.s32.totalorder %s17, 0
      %p37 = por %p35, %p36
      %p38 = scmp.ne.s32.totalorder %s27, %s30
      %p39 = scmp.eq.s32.totalorder %s22, 1
      %p40 = por %p38, %p39
      %p41 = scmp.ne.s32.totalorder %s30, %s31
      %p42 = scmp.eq.s32.totalorder %s22, 0
      %p43 = por %p41, %p42
      %p44 = scmp.ne.s32.totalorder %s30, %s31
      %p45 = scmp.eq.s32.totalorder %s23, 1
      %p46 = por %p44, %p45
      %p48 = scmp.ne.s32.totalorder %s31, %s47
      %p49 = scmp.eq.s32.totalorder %s23, 0
      %p50 = por %p48, %p49
      %s52 = sadd.s32 %s51, 1
      %p55 = scmp.eq.s32.totalorder %s17, 1
      %p56 = scmp.ne.s32.totalorder %s51, %s53
      %p57 = scmp.eq.s32.totalorder %s17, 0
      %p58 = por %p56, %p57
      %p59 = scmp.ne.s32.totalorder %s51, %s53
      %p60 = scmp.eq.s32.totalorder %s22, 1
      %p61 = por %p59, %p60
      %p62 = scmp.ne.s32.totalorder %s53, %s54
      %p63 = scmp.eq.s32.totalorder %s22, 0
      %p64 = por %p62, %p63
      %p65 = scmp.ne.s32.totalorder %s53, %s54
      %p66 = scmp.eq.s32.totalorder %s23, 1
      %p67 = por %p65, %p66
      %p69 = scmp.ne.s32.totalorder %s54, %s68
      %p70 = scmp.eq.s32.totalorder %s23, 0
      %p71 = por %p69, %p70
      %s73 = sadd.s32 %s72, 1
      %p76 = scmp.eq.s32.totalorder %s17, 1
      %p77 = scmp.ne.s32.totalorder %s72, %s74
      %p78 = scmp.eq.s32.totalorder %s17, 0
      %p79 = por %p77, %p78
      %p80 = scmp.ne.s32.totalorder %s72, %s74
      %p81 = scmp.eq.s32.totalorder %s22, 1
      %p82 = por %p80, %p81
      %p83 = scmp.ne.s32.totalorder %s74, %s75
      %p84 = scmp.eq.s32.totalorder %s22, 0
      %p85 = por %p83, %p84
      %p86 = scmp.ne.s32.totalorder %s74, %s75
      %p87 = scmp.eq.s32.totalorder %s23, 1
      %p88 = por %p86, %p87
      %p90 = scmp.ne.s32.totalorder %s75, %s89
      %p91 = scmp.eq.s32.totalorder %s23, 0
      %p92 = por %p90, %p91
      %s93 = ssub.s32 %s17, %s24
      %p94 = scmp.eq.s32.totalorder %s93, 0
      %s96 = sadd.s32 %s95, 1
      %s97 = scalar_select %p94, %s95, %s96
      %p100 = pneg %p94
      %p101 = scmp.eq.s32.totalorder %s17, 1
      %p102 = por %p100, %p101
      %p103 = scmp.ne.s32.totalorder %s95, %s98
      %p104 = scmp.eq.s32.totalorder %s17, 0
      %p105 = por %p103, %p104
      %p106 = scmp.ne.s32.totalorder %s95, %s98
      %p107 = scmp.eq.s32.totalorder %s22, 1
      %p108 = por %p106, %p107
      %p109 = scmp.ne.s32.totalorder %s98, %s99
      %p110 = scmp.eq.s32.totalorder %s22, 0
      %p111 = por %p109, %p110
      %p112 = scmp.ne.s32.totalorder %s98, %s99
      %p113 = scmp.eq.s32.totalorder %s23, 1
      %p114 = por %p112, %p113
      %p116 = scmp.ne.s32.totalorder %s99, %s115
      %p117 = scmp.eq.s32.totalorder %s23, 0
      %p118 = por %p116, %p117
      %p119 = scmp.le.s32.totalorder 1, %s17
      %p120 = scmp.lt.s32.totalorder %s17, 3
      %p121 = pnand %p119, %p120
      %p122 = pneg %p121
      // Predicated region
      $region9: #{tpu_custom_call.1} parent=5 // pred_check
        _
      $region10: #{tpu_custom_call.1} parent=5 // pred_check_branch
        %124 = sbr.rel (%p121) target = $region12
      $region11: #{tpu_custom_call.1} parent=5 // pred_region
        %s125 = ssub.s32 %s17, 1
        // Predicated region
        $region13: #{tpu_custom_call.1} parent=11 // pred_check
          %p126 = pneg %p64
        $region14: #{tpu_custom_call.1} parent=11 // pred_check_branch
          %128 = sbr.rel (%p126) target = $region16
        $region15: #{tpu_custom_call.1} parent=11 // pred_region
          %130 = vsyncadd [#allocation5], 0
          %s132 = sshll.u32 %s1, 4
          %s133 = int_to_ptr.hbm [resolvable:$true] %s132
          %135 = dma.hbm_to_smem %s133, 16, [#allocation6], [#allocation5]
        $region16: #{tpu_custom_call.1} parent=11 // pred_fallthru
          _
        // Predicated region
        $region17: #{tpu_custom_call.1} parent=11 // pred_check
          %p136 = pneg %p85
        $region18: #{tpu_custom_call.1} parent=11 // pred_check_branch
          %138 = sbr.rel (%p136) target = $region20
        $region19: #{tpu_custom_call.1} parent=11 // pred_region
          %140 = vsyncadd [#allocation8], 0
          %s142 = sshll.u32 %s2, 4
          %s143 = int_to_ptr.hbm [resolvable:$true] %s142
          %s144 = sshll.u32 [#allocation7], 4
          %s145 = int_to_ptr.vmem [resolvable:$true] %s144
          %147 = dma.hbm_to_vmem [thread:$0]  %s143, 256, %s145, [#allocation8]
        $region20: #{tpu_custom_call.1} parent=11 // pred_fallthru
          _
      $region12: #{tpu_custom_call.1} parent=5 // pred_fallthru
        _
      %p148 = scmp.lt.s32.totalorder %s17, 2
      // Predicated region
      $region21: #{tpu_custom_call.1} parent=5 // pred_check
        %p149 = pneg %p148
      $region22: #{tpu_custom_call.1} parent=5 // pred_check_branch
        %151 = sbr.rel (%p149) target = $region24
      $region23: #{tpu_custom_call.1} parent=5 // pred_region
        // Predicated region
        $region25: #{tpu_custom_call.1} parent=23 // pred_check
          %p152 = pneg %p37
        $region26: #{tpu_custom_call.1} parent=23 // pred_check_branch
          %154 = sbr.rel (%p152) target = $region28
        $region27: #{tpu_custom_call.1} parent=23 // pred_region
          %s155 = sand.u32 %s27, 1
          %s156 = scalar_lea.sflag [#allocation3], %s155
          %s157 = sand.u32 %s27, 1
          %s158 = smul.addr %s157, 8
          %s159 = scalar_lea.vmem [#allocation2], %s158
          %161 = vsyncadd %s156, 0
          %s162 = smul.addr %s17, 2
          %s163 = smul.addr %s162, 4
          %s164 = scalar_lea.hbm %s0, %s163
          %s166 = sshll.u32 %s164, 4
          %s167 = int_to_ptr.hbm [resolvable:$true] %s166
          %s168 = sshll.u32 %s159, 4
          %s169 = int_to_ptr.vmem [resolvable:$true] %s168
          %171 = dma.hbm_to_vmem [thread:$0]  %s167, 128, %s169, %s156
        $region28: #{tpu_custom_call.1} parent=23 // pred_fallthru
          _
      $region24: #{tpu_custom_call.1} parent=5 // pred_fallthru
        _
      %p172 = scmp.le.s32.totalorder 1, %s17
      %p173 = scmp.lt.s32.totalorder %s17, 3
      %p174 = pnand %p172, %p173
      %p175 = pneg %p174
      // Predicated region
      $region29: #{tpu_custom_call.1} parent=5 // pred_check
        _
      $region30: #{tpu_custom_call.1} parent=5 // pred_check_branch
        %177 = sbr.rel (%p174) target = $region32
      $region31: #{tpu_custom_call.1} parent=5 // pred_region
        %s178 = ssub.s32 %s17, 1
        %s179 = sand.u32 %s30, 1
        %s180 = scalar_lea.sflag [#allocation3], %s179
        %s181 = sand.u32 %s30, 1
        %s182 = smul.addr %s181, 8
        %s183 = scalar_lea.vmem [#allocation2], %s182
        // Predicated region
        $region33: #{tpu_custom_call.1} parent=31 // pred_check
          %p184 = pneg %p43
        $region34: #{tpu_custom_call.1} parent=31 // pred_check_branch
          %186 = sbr.rel (%p184) target = $region36
        $region35: #{tpu_custom_call.1} parent=31 // pred_region
          %188 = dma.done %s180, 128
        $region36: #{tpu_custom_call.1} parent=31 // pred_fallthru
          _
        // Predicated region
        $region37: #{tpu_custom_call.1} parent=31 // pred_check
          %p189 = pneg %p64
        $region38: #{tpu_custom_call.1} parent=31 // pred_check_branch
          %191 = sbr.rel (%p189) target = $region40
        $region39: #{tpu_custom_call.1} parent=31 // pred_region
          %193 = dma.done [#allocation5], 16
        $region40: #{tpu_custom_call.1} parent=31 // pred_fallthru
          _
        // Predicated region
        $region41: #{tpu_custom_call.1} parent=31 // pred_check
          %p194 = pneg %p85
        $region42: #{tpu_custom_call.1} parent=31 // pred_check_branch
          %196 = sbr.rel (%p194) target = $region44
        $region43: #{tpu_custom_call.1} parent=31 // pred_region
          %198 = dma.done [#allocation8], 256
        $region44: #{tpu_custom_call.1} parent=31 // pred_fallthru
          _
        %199 = sfence
        %s200 = sand.u32 %s30, 1
        %s201 = scalar_lea.sflag [#allocation3], %s200
        %s202 = sand.u32 %s30, 1
        %s203 = smul.addr %s202, 8
        %s204 = scalar_lea.vmem [#allocation2], %s203
        %p205 = pneg %p43
        %p206 = pneg %p40
        %p207 = pneg %p64
        %p208 = pneg %p61
        %p209 = pneg %p85
        %p210 = pneg %p82
        %p211 = pneg %p111
        %p212 = pneg %p108
        %s213 = sand.u32 %s98, 1
        %s214 = scalar_lea.sflag [#allocation4], %s213
        %s215 = sand.u32 %s98, 1
        %s216 = smul.addr %s215, 8
        %s217 = scalar_lea.vmem [#allocation9], %s216
        %v218 = vld [vmem:[%s183] sm:$0xff]
        %v220 = vrot.slane %v218, 5
        %v221 = vrot.slane %v220, 4
        %v223 = vadd.f32 %v218, %v221
        %v224 = vmax.f32 %v218, %v221
        %v225 = vrot.slane %v218, 6
        %v226 = vrot.slane %v225, 4
        %v228 = vadd.f32 %v223, %v226
        %v229 = vmax.f32 %v224, %v226
        %v230 = vrot.slane %v218, 7
        %v231 = vrot.slane %v230, 4
        %v233 = vadd.f32 %v228, %v231
        %v234 = vmax.f32 %v229, %v231
        %v235 = vadd.f32 %v233, 0.0
        %v236 = vmul.f32 %v235, 0.25
        %v238 = vperm.slane %v236, 0
        %v239 = vperm.slane %v236, 4
        %240 = vrot.lane.b32.xlu0 %v238, 3
        %v241 = vpop.permute.xlu0 %240
        %242 = vrot.lane.b32.xlu0 %v239, 3
        %v243 = vpop.permute.xlu0 %242
        %vm244 = vcmask 23552
        %v245 = vsel %vm244, %v241, %v243
        %v249 = vsel %vm244, 0.0, %v241
        %v250 = vsel %vm244, %v243, 0.0
        %v252 = vperm.slane %v234, 0
        %v253 = vperm.slane %v234, 4
        %254 = vrot.lane.b32.xlu0 %v252, 3
        %v255 = vpop.permute.xlu0 %254
        %256 = vrot.lane.b32.xlu0 %v253, 3
        %v257 = vpop.permute.xlu0 %256
        %v258 = vsel %vm244, %v255, %v257
        %v262 = vsel %vm244, 0.0, %v255
        %v263 = vsel %vm244, %v257, 0.0
        %v264 = vld [vmem:[#allocation7] ss:$8 sm:$0x3]
        %v266 = vperm.slane %v264, 0
        %v267 = vperm.slane %v264, 1
        %v270 = vmul.f32 %v249, %v266
        %v271 = vmul.f32 %v245, %v267
        %v272 = vmul.f32 %v262, %v266
        %v273 = vmul.f32 %v258, %v267
        %276 = vrot.lane.b32.xlu0 %v270, 48
        %v277 = vpop.permute.xlu0 %276
        %278 = vrot.lane.b32.xlu0 %v271, 48
        %v279 = vpop.permute.xlu0 %278
        %vm280 = vcmask 392192
        %v281 = vsel %vm280, %v277, %v279
        %v285 = vsel %vm280, 0.0, %v277
        %v286 = vsel %vm280, %v279, 0.0
        %289 = vrot.lane.b32.xlu0 %v272, 48
        %v290 = vpop.permute.xlu0 %289
        %291 = vrot.lane.b32.xlu0 %v273, 48
        %v292 = vpop.permute.xlu0 %291
        %v293 = vsel %vm280, %v290, %v292
        %v297 = vsel %vm280, 0.0, %v290
        %v298 = vsel %vm280, %v292, 0.0
        %s299 = sld [smem:[#allocation6]]
        %s300 = sld [smem:[#allocation6 + $0x31]]
        %v301 = vstv %s299
        %v302 = vmul.f32 %v301, %v285
        %v303 = vmul.f32 %v301, %v281
        %v304 = vadd.f32 %v302, 0.0
        %v305 = vadd.f32 %v303, 0.0
        %v306 = vstv %s300
        %v307 = vmul.f32 %v306, %v297
        %v308 = vmul.f32 %v306, %v293
        %v309 = vadd.f32 %v307, 0.0
        %v310 = vadd.f32 %v308, 0.0
        %s311 = sld [smem:[#allocation6 + $0x7]]
        %s312 = sld [smem:[#allocation6 + $0x38]]
        %v313 = vstv %s311
        %v314 = vmul.f32 %v313, %v285
        %v315 = vmul.f32 %v313, %v281
        %v316 = vmul.f32 %v313, %v286
        %v317 = vadd.f32 %v314, 0.0
        %v318 = vadd.f32 %v315, 0.0
        %v319 = vadd.f32 %v316, 0.0
        %v320 = vstv %s312
        %v321 = vmul.f32 %v320, %v297
        %v322 = vmul.f32 %v320, %v293
        %v323 = vmul.f32 %v320, %v298
        %v324 = vadd.f32 %v321, 0.0
        %v325 = vadd.f32 %v322, 0.0
        %v326 = vadd.f32 %v323, 0.0
        %s327 = sld [smem:[#allocation6 + $0xe]]
        %s328 = sld [smem:[#allocation6 + $0x3f]]
        %v329 = vstv %s327
        %v330 = vmul.f32 %v329, %v285
        %v331 = vmul.f32 %v329, %v281
        %v332 = vmul.f32 %v329, %v286
        %336 = vrot.lane.b32.xlu0 %v330, 96
        %v337 = vpop.permute.xlu0 %336
        %338 = vrot.lane.b32.xlu0 %v331, 96
        %v339 = vpop.permute.xlu0 %338
        %340 = vrot.lane.b32.xlu0 %v332, 96
        %v341 = vpop.permute.xlu0 %340
        %vm342 = vcmask 785408
        %v343 = vsel %vm342, %v337, %v339
        %v344 = vsel %vm342, %v339, %v341
        %v347 = vadd.f32 %v304, %v343
        %v348 = vadd.f32 %v305, %v344
        %v349 = vstv %s328
        %v350 = vmul.f32 %v349, %v297
        %v351 = vmul.f32 %v349, %v293
        %v352 = vmul.f32 %v349, %v298
        %356 = vrot.lane.b32.xlu0 %v350, 96
        %v357 = vpop.permute.xlu0 %356
        %358 = vrot.lane.b32.xlu0 %v351, 96
        %v359 = vpop.permute.xlu0 %358
        %360 = vrot.lane.b32.xlu0 %v352, 96
        %v361 = vpop.permute.xlu0 %360
        %v362 = vsel %vm342, %v357, %v359
        %v363 = vsel %vm342, %v359, %v361
        %v366 = vadd.f32 %v309, %v362
        %v367 = vadd.f32 %v310, %v363
        %s368 = sld [smem:[#allocation6 + $0x15]]
        %s369 = sld [smem:[#allocation6 + $0x46]]
        %v370 = vstv %s368
        %v371 = vmul.f32 %v370, %v285
        %v372 = vmul.f32 %v370, %v281
        %v373 = vmul.f32 %v370, %v286
        %377 = vrot.lane.b32.xlu0 %v371, 96
        %v378 = vpop.permute.xlu0 %377
        %379 = vrot.lane.b32.xlu0 %v372, 96
        %v380 = vpop.permute.xlu0 %379
        %381 = vrot.lane.b32.xlu0 %v373, 96
        %v382 = vpop.permute.xlu0 %381
        %v383 = vsel %vm342, %v378, %v380
        %v384 = vsel %vm342, %v380, %v382
        %v388 = vadd.f32 %v317, %v383
        %v389 = vadd.f32 %v318, %v384
        %v390 = vadd.f32 %v319, %v382
        %v391 = vstv %s369
        %v392 = vmul.f32 %v391, %v297
        %v393 = vmul.f32 %v391, %v293
        %v394 = vmul.f32 %v391, %v298
        %398 = vrot.lane.b32.xlu0 %v392, 96
        %v399 = vpop.permute.xlu0 %398
        %400 = vrot.lane.b32.xlu0 %v393, 96
        %v401 = vpop.permute.xlu0 %400
        %402 = vrot.lane.b32.xlu0 %v394, 96
        %v403 = vpop.permute.xlu0 %402
        %v404 = vsel %vm342, %v399, %v401
        %v405 = vsel %vm342, %v401, %v403
        %v409 = vadd.f32 %v324, %v404
        %v410 = vadd.f32 %v325, %v405
        %v411 = vadd.f32 %v326, %v403
        %s412 = sld [smem:[#allocation6 + $0x1c]]
        %s413 = sld [smem:[#allocation6 + $0x4d]]
        %v414 = vstv %s412
        %v415 = vmul.f32 %v414, %v285
        %v416 = vmul.f32 %v414, %v281
        %v417 = vmul.f32 %v414, %v286
        %421 = vrot.lane.b32.xlu0 %v415, 64
        %v422 = vpop.permute.xlu0 %421
        %423 = vrot.lane.b32.xlu0 %v416, 64
        %v424 = vpop.permute.xlu0 %423
        %425 = vrot.lane.b32.xlu0 %v417, 64
        %v426 = vpop.permute.xlu0 %425
        %vm427 = vcmask 523264
        %v428 = vsel %vm427, %v422, %v424
        %v429 = vsel %vm427, %v424, %v426
        %v432 = vadd.f32 %v347, %v428
        %v433 = vadd.f32 %v348, %v429
        %v434 = vstv %s413
        %v435 = vmul.f32 %v434, %v297
        %v436 = vmul.f32 %v434, %v293
        %v437 = vmul.f32 %v434, %v298
        %441 = vrot.lane.b32.xlu0 %v435, 64
        %v442 = vpop.permute.xlu0 %441
        %443 = vrot.lane.b32.xlu0 %v436, 64
        %v444 = vpop.permute.xlu0 %443
        %445 = vrot.lane.b32.xlu0 %v437, 64
        %v446 = vpop.permute.xlu0 %445
        %v447 = vsel %vm427, %v442, %v444
        %v448 = vsel %vm427, %v444, %v446
        %v451 = vadd.f32 %v366, %v447
        %v452 = vadd.f32 %v367, %v448
        %s453 = sld [smem:[#allocation6 + $0x23]]
        %s454 = sld [smem:[#allocation6 + $0x54]]
        %v455 = vstv %s453
        %v456 = vmul.f32 %v455, %v285
        %v457 = vmul.f32 %v455, %v281
        %v458 = vmul.f32 %v455, %v286
        %462 = vrot.lane.b32.xlu0 %v456, 64
        %v463 = vpop.permute.xlu0 %462
        %464 = vrot.lane.b32.xlu0 %v457, 64
        %v465 = vpop.permute.xlu0 %464
        %466 = vrot.lane.b32.xlu0 %v458, 64
        %v467 = vpop.permute.xlu0 %466
        %v468 = vsel %vm427, %v463, %v465
        %v469 = vsel %vm427, %v465, %v467
        %v473 = vadd.f32 %v388, %v468
        %v474 = vadd.f32 %v389, %v469
        %v475 = vadd.f32 %v390, %v467
        %v476 = vstv %s454
        %v477 = vmul.f32 %v476, %v297
        %v478 = vmul.f32 %v476, %v293
        %v479 = vmul.f32 %v476, %v298
        %483 = vrot.lane.b32.xlu0 %v477, 64
        %v484 = vpop.permute.xlu0 %483
        %485 = vrot.lane.b32.xlu0 %v478, 64
        %v486 = vpop.permute.xlu0 %485
        %487 = vrot.lane.b32.xlu0 %v479, 64
        %v488 = vpop.permute.xlu0 %487
        %v489 = vsel %vm427, %v484, %v486
        %v490 = vsel %vm427, %v486, %v488
        %v494 = vadd.f32 %v409, %v489
        %v495 = vadd.f32 %v410, %v490
        %v496 = vadd.f32 %v411, %v488
        %s497 = sld [smem:[#allocation6 + $0x2a]]
        %s498 = sld [smem:[#allocation6 + $0x5b]]
        %v499 = vstv %s497
        %v500 = vmul.f32 %v499, %v285
        %v501 = vmul.f32 %v499, %v281
        %v502 = vmul.f32 %v499, %v286
        %506 = vrot.lane.b32.xlu0 %v500, 32
        %v507 = vpop.permute.xlu0 %506
        %508 = vrot.lane.b32.xlu0 %v501, 32
        %v509 = vpop.permute.xlu0 %508
        %510 = vrot.lane.b32.xlu0 %v502, 32
        %v511 = vpop.permute.xlu0 %510
        %vm512 = vcmask 261120
        %v513 = vsel %vm512, %v507, %v509
        %v514 = vsel %vm512, %v509, %v511
        %v517 = vadd.f32 %v432, %v513
        %v518 = vadd.f32 %v433, %v514
        %v519 = vstv %s498
        %v520 = vmul.f32 %v519, %v297
        %v521 = vmul.f32 %v519, %v293
        %v522 = vmul.f32 %v519, %v298
        %526 = vrot.lane.b32.xlu0 %v520, 32
        %v527 = vpop.permute.xlu0 %526
        %528 = vrot.lane.b32.xlu0 %v521, 32
        %v529 = vpop.permute.xlu0 %528
        %530 = vrot.lane.b32.xlu0 %v522, 32
        %v531 = vpop.permute.xlu0 %530
        %v532 = vsel %vm512, %v527, %v529
        %v533 = vsel %vm512, %v529, %v531
        %v536 = vadd.f32 %v451, %v532
        %v537 = vadd.f32 %v452, %v533
        %s538 = scalar_lea.vmem [#allocation7], 1
        %v539 = vld [vmem:[%s538] ss:$8 sm:$0x3]
        %v541 = vperm.slane %v539, 0
        %v542 = vperm.slane %v539, 1
        %543 = vrot.lane.b32.xlu0 %v541, 1
        %v544 = vpop.permute.xlu0 %543
        %545 = vrot.lane.b32.xlu0 %v542, 1
        %v546 = vpop.permute.xlu0 %545
        %vm547 = vcmask 7168
        %v548 = vsel %vm547, %v544, %v546
        %v552 = vmul.f32 %v249, %v544
        %v553 = vmul.f32 %v245, %v548
        %v554 = vmul.f32 %v250, %v546
        %v555 = vmul.f32 %v262, %v544
        %v556 = vmul.f32 %v258, %v548
        %v557 = vmul.f32 %v263, %v546
        %561 = vrot.lane.b32.xlu0 %v552, 47
        %v562 = vpop.permute.xlu0 %561
        %563 = vrot.lane.b32.xlu0 %v553, 47
        %v564 = vpop.permute.xlu0 %563
        %565 = vrot.lane.b32.xlu0 %v554, 47
        %v566 = vpop.permute.xlu0 %565
        %vm567 = vcmask 384000
        %v568 = vsel %vm567, %v562, %v564
        %v569 = vsel %vm567, %v564, %v566
        %v573 = vsel %vm280, 0.0, %v562
        %v574 = vsel %vm280, %v569, 0.0
        %578 = vrot.lane.b32.xlu0 %v555, 47
        %v579 = vpop.permute.xlu0 %578
        %580 = vrot.lane.b32.xlu0 %v556, 47
        %v581 = vpop.permute.xlu0 %580
        %582 = vrot.lane.b32.xlu0 %v557, 47
        %v583 = vpop.permute.xlu0 %582
        %v584 = vsel %vm567, %v579, %v581
        %v585 = vsel %vm567, %v581, %v583
        %v589 = vsel %vm280, 0.0, %v579
        %v590 = vsel %vm280, %v585, 0.0
        %s591 = sld [smem:[#allocation6 + $0x1]]
        %s592 = sld [smem:[#allocation6 + $0x32]]
        %v593 = vstv %s591
        %v594 = vmul.f32 %v593, %v573
        %v595 = vmul.f32 %v593, %v568
        %v596 = vadd.f32 %v517, %v594
        %v597 = vadd.f32 %v518, %v595
        %v598 = vstv %s592
        %v599 = vmul.f32 %v598, %v589
        %v600 = vmul.f32 %v598, %v584
        %v601 = vadd.f32 %v536, %v599
        %v602 = vadd.f32 %v537, %v600
        %s603 = sld [smem:[#allocation6 + $0x8]]
        %s604 = sld [smem:[#allocation6 + $0x39]]
        %v605 = vstv %s603
        %v606 = vmul.f32 %v605, %v573
        %v607 = vmul.f32 %v605, %v568
        %v608 = vmul.f32 %v605, %v574
        %v609 = vadd.f32 %v473, %v606
        %v610 = vadd.f32 %v474, %v607
        %v611 = vadd.f32 %v475, %v608
        %v612 = vstv %s604
        %v613 = vmul.f32 %v612, %v589
        %v614 = vmul.f32 %v612, %v584
        %v615 = vmul.f32 %v612, %v590
        %v616 = vadd.f32 %v494, %v613
        %v617 = vadd.f32 %v495, %v614
        %v618 = vadd.f32 %v496, %v615
        %s619 = sld [smem:[#allocation6 + $0xf]]
        %s620 = sld [smem:[#allocation6 + $0x40]]
        %v621 = vstv %s619
        %v622 = vmul.f32 %v621, %v573
        %v623 = vmul.f32 %v621, %v568
        %v624 = vmul.f32 %v621, %v574
        %628 = vrot.lane.b32.xlu0 %v622, 96
        %v629 = vpop.permute.xlu0 %628
        %630 = vrot.lane.b32.xlu0 %v623, 96
        %v631 = vpop.permute.xlu0 %630
        %632 = vrot.lane.b32.xlu0 %v624, 96
        %v633 = vpop.permute.xlu0 %632
        %v634 = vsel %vm342, %v629, %v631
        %v635 = vsel %vm342, %v631, %v633
        %v638 = vadd.f32 %v596, %v634
        %v639 = vadd.f32 %v597, %v635
        %v640 = vstv %s620
        %v641 = vmul.f32 %v640, %v589
        %v642 = vmul.f32 %v640, %v584
        %v643 = vmul.f32 %v640, %v590
        %647 = vrot.lane.b32.xlu0 %v641, 96
        %v648 = vpop.permute.xlu0 %647
        %649 = vrot.lane.b32.xlu0 %v642, 96
        %v650 = vpop.permute.xlu0 %649
        %651 = vrot.lane.b32.xlu0 %v643, 96
        %v652 = vpop.permute.xlu0 %651
        %v653 = vsel %vm342, %v648, %v650
        %v654 = vsel %vm342, %v650, %v652
        %v657 = vadd.f32 %v601, %v653
        %v658 = vadd.f32 %v602, %v654
        %s659 = sld [smem:[#allocation6 + $0x16]]
        %s660 = sld [smem:[#allocation6 + $0x47]]
        %v661 = vstv %s659
        %v662 = vmul.f32 %v661, %v573
        %v663 = vmul.f32 %v661, %v568
        %v664 = vmul.f32 %v661, %v574
        %668 = vrot.lane.b32.xlu0 %v662, 96
        %v669 = vpop.permute.xlu0 %668
        %670 = vrot.lane.b32.xlu0 %v663, 96
        %v671 = vpop.permute.xlu0 %670
        %672 = vrot.lane.b32.xlu0 %v664, 96
        %v673 = vpop.permute.xlu0 %672
        %v674 = vsel %vm342, %v669, %v671
        %v675 = vsel %vm342, %v671, %v673
        %v679 = vadd.f32 %v609, %v674
        %v680 = vadd.f32 %v610, %v675
        %v681 = vadd.f32 %v611, %v673
        %v682 = vstv %s660
        %v683 = vmul.f32 %v682, %v589
        %v684 = vmul.f32 %v682, %v584
        %v685 = vmul.f32 %v682, %v590
        %689 = vrot.lane.b32.xlu0 %v683, 96
        %v690 = vpop.permute.xlu0 %689
        %691 = vrot.lane.b32.xlu0 %v684, 96
        %v692 = vpop.permute.xlu0 %691
        %693 = vrot.lane.b32.xlu0 %v685, 96
        %v694 = vpop.permute.xlu0 %693
        %v695 = vsel %vm342, %v690, %v692
        %v696 = vsel %vm342, %v692, %v694
        %v700 = vadd.f32 %v616, %v695
        %v701 = vadd.f32 %v617, %v696
        %v702 = vadd.f32 %v618, %v694
        %s703 = sld [smem:[#allocation6 + $0x1d]]
        %s704 = sld [smem:[#allocation6 + $0x4e]]
        %v705 = vstv %s703
        %v706 = vmul.f32 %v705, %v573
        %v707 = vmul.f32 %v705, %v568
        %v708 = vmul.f32 %v705, %v574
        %712 = vrot.lane.b32.xlu0 %v706, 64
        %v713 = vpop.permute.xlu0 %712
        %714 = vrot.lane.b32.xlu0 %v707, 64
        %v715 = vpop.permute.xlu0 %714
        %716 = vrot.lane.b32.xlu0 %v708, 64
        %v717 = vpop.permute.xlu0 %716
        %v718 = vsel %vm427, %v713, %v715
        %v719 = vsel %vm427, %v715, %v717
        %v722 = vadd.f32 %v638, %v718
        %v723 = vadd.f32 %v639, %v719
        %v724 = vstv %s704
        %v725 = vmul.f32 %v724, %v589
        %v726 = vmul.f32 %v724, %v584
        %v727 = vmul.f32 %v724, %v590
        %731 = vrot.lane.b32.xlu0 %v725, 64
        %v732 = vpop.permute.xlu0 %731
        %733 = vrot.lane.b32.xlu0 %v726, 64
        %v734 = vpop.permute.xlu0 %733
        %735 = vrot.lane.b32.xlu0 %v727, 64
        %v736 = vpop.permute.xlu0 %735
        %v737 = vsel %vm427, %v732, %v734
        %v738 = vsel %vm427, %v734, %v736
        %v741 = vadd.f32 %v657, %v737
        %v742 = vadd.f32 %v658, %v738
        %s743 = sld [smem:[#allocation6 + $0x24]]
        %s744 = sld [smem:[#allocation6 + $0x55]]
        %v745 = vstv %s743
        %v746 = vmul.f32 %v745, %v573
        %v747 = vmul.f32 %v745, %v568
        %v748 = vmul.f32 %v745, %v574
        %752 = vrot.lane.b32.xlu0 %v746, 64
        %v753 = vpop.permute.xlu0 %752
        %754 = vrot.lane.b32.xlu0 %v747, 64
        %v755 = vpop.permute.xlu0 %754
        %756 = vrot.lane.b32.xlu0 %v748, 64
        %v757 = vpop.permute.xlu0 %756
        %v758 = vsel %vm427, %v753, %v755
        %v759 = vsel %vm427, %v755, %v757
        %v763 = vadd.f32 %v679, %v758
        %v764 = vadd.f32 %v680, %v759
        %v765 = vadd.f32 %v681, %v757
        %v766 = vstv %s744
        %v767 = vmul.f32 %v766, %v589
        %v768 = vmul.f32 %v766, %v584
        %v769 = vmul.f32 %v766, %v590
        %773 = vrot.lane.b32.xlu0 %v767, 64
        %v774 = vpop.permute.xlu0 %773
        %775 = vrot.lane.b32.xlu0 %v768, 64
        %v776 = vpop.permute.xlu0 %775
        %777 = vrot.lane.b32.xlu0 %v769, 64
        %v778 = vpop.permute.xlu0 %777
        %v779 = vsel %vm427, %v774, %v776
        %v780 = vsel %vm427, %v776, %v778
        %v784 = vadd.f32 %v700, %v779
        %v785 = vadd.f32 %v701, %v780
        %v786 = vadd.f32 %v702, %v778
        %s787 = sld [smem:[#allocation6 + $0x2b]]
        %s788 = sld [smem:[#allocation6 + $0x5c]]
        %v789 = vstv %s787
        %v790 = vmul.f32 %v789, %v573
        %v791 = vmul.f32 %v789, %v568
        %v792 = vmul.f32 %v789, %v574
        %796 = vrot.lane.b32.xlu0 %v790, 32
        %v797 = vpop.permute.xlu0 %796
        %798 = vrot.lane.b32.xlu0 %v791, 32
        %v799 = vpop.permute.xlu0 %798
        %800 = vrot.lane.b32.xlu0 %v792, 32
        %v801 = vpop.permute.xlu0 %800
        %v802 = vsel %vm512, %v797, %v799
        %v803 = vsel %vm512, %v799, %v801
        %v806 = vadd.f32 %v722, %v802
        %v807 = vadd.f32 %v723, %v803
        %v808 = vstv %s788
        %v809 = vmul.f32 %v808, %v589
        %v810 = vmul.f32 %v808, %v584
        %v811 = vmul.f32 %v808, %v590
        %815 = vrot.lane.b32.xlu0 %v809, 32
        %v816 = vpop.permute.xlu0 %815
        %817 = vrot.lane.b32.xlu0 %v810, 32
        %v818 = vpop.permute.xlu0 %817
        %819 = vrot.lane.b32.xlu0 %v811, 32
        %v820 = vpop.permute.xlu0 %819
        %v821 = vsel %vm512, %v816, %v818
        %v822 = vsel %vm512, %v818, %v820
        %v825 = vadd.f32 %v741, %v821
        %v826 = vadd.f32 %v742, %v822
        %s827 = scalar_lea.vmem [#allocation7], 2
        %v828 = vld [vmem:[%s827] ss:$8 sm:$0x3]
        %v830 = vperm.slane %v828, 0
        %v831 = vperm.slane %v828, 1
        %832 = vrot.lane.b32.xlu0 %v830, 2
        %v833 = vpop.permute.xlu0 %832
        %834 = vrot.lane.b32.xlu0 %v831, 2
        %v835 = vpop.permute.xlu0 %834
        %vm836 = vcmask 15360
        %v837 = vsel %vm836, %v833, %v835
        %v841 = vmul.f32 %v249, %v833
        %v842 = vmul.f32 %v245, %v837
        %v843 = vmul.f32 %v250, %v835
        %v844 = vmul.f32 %v262, %v833
        %v845 = vmul.f32 %v258, %v837
        %v846 = vmul.f32 %v263, %v835
        %850 = vrot.lane.b32.xlu0 %v841, 46
        %v851 = vpop.permute.xlu0 %850
        %852 = vrot.lane.b32.xlu0 %v842, 46
        %v853 = vpop.permute.xlu0 %852
        %854 = vrot.lane.b32.xlu0 %v843, 46
        %v855 = vpop.permute.xlu0 %854
        %vm856 = vcmask 375808
        %v857 = vsel %vm856, %v851, %v853
        %v858 = vsel %vm856, %v853, %v855
        %v862 = vsel %vm280, 0.0, %v851
        %v863 = vsel %vm280, %v858, 0.0
        %867 = vrot.lane.b32.xlu0 %v844, 46
        %v868 = vpop.permute.xlu0 %867
        %869 = vrot.lane.b32.xlu0 %v845, 46
        %v870 = vpop.permute.xlu0 %869
        %871 = vrot.lane.b32.xlu0 %v846, 46
        %v872 = vpop.permute.xlu0 %871
        %v873 = vsel %vm856, %v868, %v870
        %v874 = vsel %vm856, %v870, %v872
        %v878 = vsel %vm280, 0.0, %v868
        %v879 = vsel %vm280, %v874, 0.0
        %s880 = sld [smem:[#allocation6 + $0x2]]
        %s881 = sld [smem:[#allocation6 + $0x33]]
        %v882 = vstv %s880
        %v883 = vmul.f32 %v882, %v862
        %v884 = vmul.f32 %v882, %v857
        %v885 = vadd.f32 %v806, %v883
        %v886 = vadd.f32 %v807, %v884
        %v887 = vstv %s881
        %v888 = vmul.f32 %v887, %v878
        %v889 = vmul.f32 %v887, %v873
        %v890 = vadd.f32 %v825, %v888
        %v891 = vadd.f32 %v826, %v889
        %s892 = sld [smem:[#allocation6 + $0x9]]
        %s893 = sld [smem:[#allocation6 + $0x3a]]
        %v894 = vstv %s892
        %v895 = vmul.f32 %v894, %v862
        %v896 = vmul.f32 %v894, %v857
        %v897 = vmul.f32 %v894, %v863
        %v898 = vadd.f32 %v763, %v895
        %v899 = vadd.f32 %v764, %v896
        %v900 = vadd.f32 %v765, %v897
        %v901 = vstv %s893
        %v902 = vmul.f32 %v901, %v878
        %v903 = vmul.f32 %v901, %v873
        %v904 = vmul.f32 %v901, %v879
        %v905 = vadd.f32 %v784, %v902
        %v906 = vadd.f32 %v785, %v903
        %v907 = vadd.f32 %v786, %v904
        %s908 = sld [smem:[#allocation6 + $0x10]]
        %s909 = sld [smem:[#allocation6 + $0x41]]
        %v910 = vstv %s908
        %v911 = vmul.f32 %v910, %v862
        %v912 = vmul.f32 %v910, %v857
        %v913 = vmul.f32 %v910, %v863
        %917 = vrot.lane.b32.xlu0 %v911, 96
        %v918 = vpop.permute.xlu0 %917
        %919 = vrot.lane.b32.xlu0 %v912, 96
        %v920 = vpop.permute.xlu0 %919
        %921 = vrot.lane.b32.xlu0 %v913, 96
        %v922 = vpop.permute.xlu0 %921
        %v923 = vsel %vm342, %v918, %v920
        %v924 = vsel %vm342, %v920, %v922
        %v927 = vadd.f32 %v885, %v923
        %v928 = vadd.f32 %v886, %v924
        %v929 = vstv %s909
        %v930 = vmul.f32 %v929, %v878
        %v931 = vmul.f32 %v929, %v873
        %v932 = vmul.f32 %v929, %v879
        %936 = vrot.lane.b32.xlu0 %v930, 96
        %v937 = vpop.permute.xlu0 %936
        %938 = vrot.lane.b32.xlu0 %v931, 96
        %v939 = vpop.permute.xlu0 %938
        %940 = vrot.lane.b32.xlu0 %v932, 96
        %v941 = vpop.permute.xlu0 %940
        %v942 = vsel %vm342, %v937, %v939
        %v943 = vsel %vm342, %v939, %v941
        %v946 = vadd.f32 %v890, %v942
        %v947 = vadd.f32 %v891, %v943
        %s948 = sld [smem:[#allocation6 + $0x17]]
        %s949 = sld [smem:[#allocation6 + $0x48]]
        %v950 = vstv %s948
        %v951 = vmul.f32 %v950, %v862
        %v952 = vmul.f32 %v950, %v857
        %v953 = vmul.f32 %v950, %v863
        %957 = vrot.lane.b32.xlu0 %v951, 96
        %v958 = vpop.permute.xlu0 %957
        %959 = vrot.lane.b32.xlu0 %v952, 96
        %v960 = vpop.permute.xlu0 %959
        %961 = vrot.lane.b32.xlu0 %v953, 96
        %v962 = vpop.permute.xlu0 %961
        %v963 = vsel %vm342, %v958, %v960
        %v964 = vsel %vm342, %v960, %v962
        %v968 = vadd.f32 %v898, %v963
        %v969 = vadd.f32 %v899, %v964
        %v970 = vadd.f32 %v900, %v962
        %v971 = vstv %s949
        %v972 = vmul.f32 %v971, %v878
        %v973 = vmul.f32 %v971, %v873
        %v974 = vmul.f32 %v971, %v879
        %978 = vrot.lane.b32.xlu0 %v972, 96
        %v979 = vpop.permute.xlu0 %978
        %980 = vrot.lane.b32.xlu0 %v973, 96
        %v981 = vpop.permute.xlu0 %980
        %982 = vrot.lane.b32.xlu0 %v974, 96
        %v983 = vpop.permute.xlu0 %982
        %v984 = vsel %vm342, %v979, %v981
        %v985 = vsel %vm342, %v981, %v983
        %v989 = vadd.f32 %v905, %v984
        %v990 = vadd.f32 %v906, %v985
        %v991 = vadd.f32 %v907, %v983
        %s992 = sld [smem:[#allocation6 + $0x1e]]
        %s993 = sld [smem:[#allocation6 + $0x4f]]
        %v994 = vstv %s992
        %v995 = vmul.f32 %v994, %v862
        %v996 = vmul.f32 %v994, %v857
        %v997 = vmul.f32 %v994, %v863
        %1001 = vrot.lane.b32.xlu0 %v995, 64
        %v1002 = vpop.permute.xlu0 %1001
        %1003 = vrot.lane.b32.xlu0 %v996, 64
        %v1004 = vpop.permute.xlu0 %1003
        %1005 = vrot.lane.b32.xlu0 %v997, 64
        %v1006 = vpop.permute.xlu0 %1005
        %v1007 = vsel %vm427, %v1002, %v1004
        %v1008 = vsel %vm427, %v1004, %v1006
        %v1011 = vadd.f32 %v927, %v1007
        %v1012 = vadd.f32 %v928, %v1008
        %v1013 = vstv %s993
        %v1014 = vmul.f32 %v1013, %v878
        %v1015 = vmul.f32 %v1013, %v873
        %v1016 = vmul.f32 %v1013, %v879
        %1020 = vrot.lane.b32.xlu0 %v1014, 64
        %v1021 = vpop.permute.xlu0 %1020
        %1022 = vrot.lane.b32.xlu0 %v1015, 64
        %v1023 = vpop.permute.xlu0 %1022
        %1024 = vrot.lane.b32.xlu0 %v1016, 64
        %v1025 = vpop.permute.xlu0 %1024
        %v1026 = vsel %vm427, %v1021, %v1023
        %v1027 = vsel %vm427, %v1023, %v1025
        %v1030 = vadd.f32 %v946, %v1026
        %v1031 = vadd.f32 %v947, %v1027
        %s1032 = sld [smem:[#allocation6 + $0x25]]
        %s1033 = sld [smem:[#allocation6 + $0x56]]
        %v1034 = vstv %s1032
        %v1035 = vmul.f32 %v1034, %v862
        %v1036 = vmul.f32 %v1034, %v857
        %v1037 = vmul.f32 %v1034, %v863
        %1041 = vrot.lane.b32.xlu0 %v1035, 64
        %v1042 = vpop.permute.xlu0 %1041
        %1043 = vrot.lane.b32.xlu0 %v1036, 64
        %v1044 = vpop.permute.xlu0 %1043
        %1045 = vrot.lane.b32.xlu0 %v1037, 64
        %v1046 = vpop.permute.xlu0 %1045
        %v1047 = vsel %vm427, %v1042, %v1044
        %v1048 = vsel %vm427, %v1044, %v1046
        %v1052 = vadd.f32 %v968, %v1047
        %v1053 = vadd.f32 %v969, %v1048
        %v1054 = vadd.f32 %v970, %v1046
        %v1055 = vstv %s1033
        %v1056 = vmul.f32 %v1055, %v878
        %v1057 = vmul.f32 %v1055, %v873
        %v1058 = vmul.f32 %v1055, %v879
        %1062 = vrot.lane.b32.xlu0 %v1056, 64
        %v1063 = vpop.permute.xlu0 %1062
        %1064 = vrot.lane.b32.xlu0 %v1057, 64
        %v1065 = vpop.permute.xlu0 %1064
        %1066 = vrot.lane.b32.xlu0 %v1058, 64
        %v1067 = vpop.permute.xlu0 %1066
        %v1068 = vsel %vm427, %v1063, %v1065
        %v1069 = vsel %vm427, %v1065, %v1067
        %v1073 = vadd.f32 %v989, %v1068
        %v1074 = vadd.f32 %v990, %v1069
        %v1075 = vadd.f32 %v991, %v1067
        %s1076 = sld [smem:[#allocation6 + $0x2c]]
        %s1077 = sld [smem:[#allocation6 + $0x5d]]
        %v1078 = vstv %s1076
        %v1079 = vmul.f32 %v1078, %v862
        %v1080 = vmul.f32 %v1078, %v857
        %v1081 = vmul.f32 %v1078, %v863
        %1085 = vrot.lane.b32.xlu0 %v1079, 32
        %v1086 = vpop.permute.xlu0 %1085
        %1087 = vrot.lane.b32.xlu0 %v1080, 32
        %v1088 = vpop.permute.xlu0 %1087
        %1089 = vrot.lane.b32.xlu0 %v1081, 32
        %v1090 = vpop.permute.xlu0 %1089
        %v1091 = vsel %vm512, %v1086, %v1088
        %v1092 = vsel %vm512, %v1088, %v1090
        %v1095 = vadd.f32 %v1011, %v1091
        %v1096 = vadd.f32 %v1012, %v1092
        %v1097 = vstv %s1077
        %v1098 = vmul.f32 %v1097, %v878
        %v1099 = vmul.f32 %v1097, %v873
        %v1100 = vmul.f32 %v1097, %v879
        %1104 = vrot.lane.b32.xlu0 %v1098, 32
        %v1105 = vpop.permute.xlu0 %1104
        %1106 = vrot.lane.b32.xlu0 %v1099, 32
        %v1107 = vpop.permute.xlu0 %1106
        %1108 = vrot.lane.b32.xlu0 %v1100, 32
        %v1109 = vpop.permute.xlu0 %1108
        %v1110 = vsel %vm512, %v1105, %v1107
        %v1111 = vsel %vm512, %v1107, %v1109
        %v1114 = vadd.f32 %v1030, %v1110
        %v1115 = vadd.f32 %v1031, %v1111
        %s1116 = scalar_lea.vmem [#allocation7], 3
        %v1117 = vld [vmem:[%s1116] ss:$8 sm:$0x3]
        %v1119 = vperm.slane %v1117, 0
        %v1120 = vperm.slane %v1117, 1
        %1121 = vrot.lane.b32.xlu0 %v1119, 3
        %v1122 = vpop.permute.xlu0 %1121
        %1123 = vrot.lane.b32.xlu0 %v1120, 3
        %v1124 = vpop.permute.xlu0 %1123
        %v1125 = vsel %vm244, %v1122, %v1124
        %v1129 = vmul.f32 %v249, %v1122
        %v1130 = vmul.f32 %v245, %v1125
        %v1131 = vmul.f32 %v250, %v1124
        %v1132 = vmul.f32 %v262, %v1122
        %v1133 = vmul.f32 %v258, %v1125
        %v1134 = vmul.f32 %v263, %v1124
        %1138 = vrot.lane.b32.xlu0 %v1129, 45
        %v1139 = vpop.permute.xlu0 %1138
        %1140 = vrot.lane.b32.xlu0 %v1130, 45
        %v1141 = vpop.permute.xlu0 %1140
        %1142 = vrot.lane.b32.xlu0 %v1131, 45
        %v1143 = vpop.permute.xlu0 %1142
        %vm1144 = vcmask 367616
        %v1145 = vsel %vm1144, %v1139, %v1141
        %v1146 = vsel %vm1144, %v1141, %v1143
        %v1150 = vsel %vm280, 0.0, %v1139
        %v1151 = vsel %vm280, %v1146, 0.0
        %1155 = vrot.lane.b32.xlu0 %v1132, 45
        %v1156 = vpop.permute.xlu0 %1155
        %1157 = vrot.lane.b32.xlu0 %v1133, 45
        %v1158 = vpop.permute.xlu0 %1157
        %1159 = vrot.lane.b32.xlu0 %v1134, 45
        %v1160 = vpop.permute.xlu0 %1159
        %v1161 = vsel %vm1144, %v1156, %v1158
        %v1162 = vsel %vm1144, %v1158, %v1160
        %v1166 = vsel %vm280, 0.0, %v1156
        %v1167 = vsel %vm280, %v1162, 0.0
        %s1168 = sld [smem:[#allocation6 + $0x3]]
        %s1169 = sld [smem:[#allocation6 + $0x34]]
        %v1170 = vstv %s1168
        %v1171 = vmul.f32 %v1170, %v1150
        %v1172 = vmul.f32 %v1170, %v1145
        %v1173 = vadd.f32 %v1095, %v1171
        %v1174 = vadd.f32 %v1096, %v1172
        %v1175 = vstv %s1169
        %v1176 = vmul.f32 %v1175, %v1166
        %v1177 = vmul.f32 %v1175, %v1161
        %v1178 = vadd.f32 %v1114, %v1176
        %v1179 = vadd.f32 %v1115, %v1177
        %s1180 = sld [smem:[#allocation6 + $0xa]]
        %s1181 = sld [smem:[#allocation6 + $0x3b]]
        %v1182 = vstv %s1180
        %v1183 = vmul.f32 %v1182, %v1150
        %v1184 = vmul.f32 %v1182, %v1145
        %v1185 = vmul.f32 %v1182, %v1151
        %v1186 = vadd.f32 %v1052, %v1183
        %v1187 = vadd.f32 %v1053, %v1184
        %v1188 = vadd.f32 %v1054, %v1185
        %v1189 = vstv %s1181
        %v1190 = vmul.f32 %v1189, %v1166
        %v1191 = vmul.f32 %v1189, %v1161
        %v1192 = vmul.f32 %v1189, %v1167
        %v1193 = vadd.f32 %v1073, %v1190
        %v1194 = vadd.f32 %v1074, %v1191
        %v1195 = vadd.f32 %v1075, %v1192
        %s1196 = sld [smem:[#allocation6 + $0x11]]
        %s1197 = sld [smem:[#allocation6 + $0x42]]
        %v1198 = vstv %s1196
        %v1199 = vmul.f32 %v1198, %v1150
        %v1200 = vmul.f32 %v1198, %v1145
        %v1201 = vmul.f32 %v1198, %v1151
        %1205 = vrot.lane.b32.xlu0 %v1199, 96
        %v1206 = vpop.permute.xlu0 %1205
        %1207 = vrot.lane.b32.xlu0 %v1200, 96
        %v1208 = vpop.permute.xlu0 %1207
        %1209 = vrot.lane.b32.xlu0 %v1201, 96
        %v1210 = vpop.permute.xlu0 %1209
        %v1211 = vsel %vm342, %v1206, %v1208
        %v1212 = vsel %vm342, %v1208, %v1210
        %v1215 = vadd.f32 %v1173, %v1211
        %v1216 = vadd.f32 %v1174, %v1212
        %v1217 = vstv %s1197
        %v1218 = vmul.f32 %v1217, %v1166
        %v1219 = vmul.f32 %v1217, %v1161
        %v1220 = vmul.f32 %v1217, %v1167
        %1224 = vrot.lane.b32.xlu0 %v1218, 96
        %v1225 = vpop.permute.xlu0 %1224
        %1226 = vrot.lane.b32.xlu0 %v1219, 96
        %v1227 = vpop.permute.xlu0 %1226
        %1228 = vrot.lane.b32.xlu0 %v1220, 96
        %v1229 = vpop.permute.xlu0 %1228
        %v1230 = vsel %vm342, %v1225, %v1227
        %v1231 = vsel %vm342, %v1227, %v1229
        %v1234 = vadd.f32 %v1178, %v1230
        %v1235 = vadd.f32 %v1179, %v1231
        %s1236 = sld [smem:[#allocation6 + $0x18]]
        %s1237 = sld [smem:[#allocation6 + $0x49]]
        %v1238 = vstv %s1236
        %v1239 = vmul.f32 %v1238, %v1150
        %v1240 = vmul.f32 %v1238, %v1145
        %v1241 = vmul.f32 %v1238, %v1151
        %1245 = vrot.lane.b32.xlu0 %v1239, 96
        %v1246 = vpop.permute.xlu0 %1245
        %1247 = vrot.lane.b32.xlu0 %v1240, 96
        %v1248 = vpop.permute.xlu0 %1247
        %1249 = vrot.lane.b32.xlu0 %v1241, 96
        %v1250 = vpop.permute.xlu0 %1249
        %v1251 = vsel %vm342, %v1246, %v1248
        %v1252 = vsel %vm342, %v1248, %v1250
        %v1256 = vadd.f32 %v1186, %v1251
        %v1257 = vadd.f32 %v1187, %v1252
        %v1258 = vadd.f32 %v1188, %v1250
        %v1259 = vstv %s1237
        %v1260 = vmul.f32 %v1259, %v1166
        %v1261 = vmul.f32 %v1259, %v1161
        %v1262 = vmul.f32 %v1259, %v1167
        %1266 = vrot.lane.b32.xlu0 %v1260, 96
        %v1267 = vpop.permute.xlu0 %1266
        %1268 = vrot.lane.b32.xlu0 %v1261, 96
        %v1269 = vpop.permute.xlu0 %1268
        %1270 = vrot.lane.b32.xlu0 %v1262, 96
        %v1271 = vpop.permute.xlu0 %1270
        %v1272 = vsel %vm342, %v1267, %v1269
        %v1273 = vsel %vm342, %v1269, %v1271
        %v1277 = vadd.f32 %v1193, %v1272
        %v1278 = vadd.f32 %v1194, %v1273
        %v1279 = vadd.f32 %v1195, %v1271
        %s1280 = sld [smem:[#allocation6 + $0x1f]]
        %s1281 = sld [smem:[#allocation6 + $0x50]]
        %v1282 = vstv %s1280
        %v1283 = vmul.f32 %v1282, %v1150
        %v1284 = vmul.f32 %v1282, %v1145
        %v1285 = vmul.f32 %v1282, %v1151
        %1289 = vrot.lane.b32.xlu0 %v1283, 64
        %v1290 = vpop.permute.xlu0 %1289
        %1291 = vrot.lane.b32.xlu0 %v1284, 64
        %v1292 = vpop.permute.xlu0 %1291
        %1293 = vrot.lane.b32.xlu0 %v1285, 64
        %v1294 = vpop.permute.xlu0 %1293
        %v1295 = vsel %vm427, %v1290, %v1292
        %v1296 = vsel %vm427, %v1292, %v1294
        %v1299 = vadd.f32 %v1215, %v1295
        %v1300 = vadd.f32 %v1216, %v1296
        %v1301 = vstv %s1281
        %v1302 = vmul.f32 %v1301, %v1166
        %v1303 = vmul.f32 %v1301, %v1161
        %v1304 = vmul.f32 %v1301, %v1167
        %1308 = vrot.lane.b32.xlu0 %v1302, 64
        %v1309 = vpop.permute.xlu0 %1308
        %1310 = vrot.lane.b32.xlu0 %v1303, 64
        %v1311 = vpop.permute.xlu0 %1310
        %1312 = vrot.lane.b32.xlu0 %v1304, 64
        %v1313 = vpop.permute.xlu0 %1312
        %v1314 = vsel %vm427, %v1309, %v1311
        %v1315 = vsel %vm427, %v1311, %v1313
        %v1318 = vadd.f32 %v1234, %v1314
        %v1319 = vadd.f32 %v1235, %v1315
        %s1320 = sld [smem:[#allocation6 + $0x26]]
        %s1321 = sld [smem:[#allocation6 + $0x57]]
        %v1322 = vstv %s1320
        %v1323 = vmul.f32 %v1322, %v1150
        %v1324 = vmul.f32 %v1322, %v1145
        %v1325 = vmul.f32 %v1322, %v1151
        %1329 = vrot.lane.b32.xlu0 %v1323, 64
        %v1330 = vpop.permute.xlu0 %1329
        %1331 = vrot.lane.b32.xlu0 %v1324, 64
        %v1332 = vpop.permute.xlu0 %1331
        %1333 = vrot.lane.b32.xlu0 %v1325, 64
        %v1334 = vpop.permute.xlu0 %1333
        %v1335 = vsel %vm427, %v1330, %v1332
        %v1336 = vsel %vm427, %v1332, %v1334
        %v1340 = vadd.f32 %v1256, %v1335
        %v1341 = vadd.f32 %v1257, %v1336
        %v1342 = vadd.f32 %v1258, %v1334
        %v1343 = vstv %s1321
        %v1344 = vmul.f32 %v1343, %v1166
        %v1345 = vmul.f32 %v1343, %v1161
        %v1346 = vmul.f32 %v1343, %v1167
        %1350 = vrot.lane.b32.xlu0 %v1344, 64
        %v1351 = vpop.permute.xlu0 %1350
        %1352 = vrot.lane.b32.xlu0 %v1345, 64
        %v1353 = vpop.permute.xlu0 %1352
        %1354 = vrot.lane.b32.xlu0 %v1346, 64
        %v1355 = vpop.permute.xlu0 %1354
        %v1356 = vsel %vm427, %v1351, %v1353
        %v1357 = vsel %vm427, %v1353, %v1355
        %v1361 = vadd.f32 %v1277, %v1356
        %v1362 = vadd.f32 %v1278, %v1357
        %v1363 = vadd.f32 %v1279, %v1355
        %s1364 = sld [smem:[#allocation6 + $0x2d]]
        %s1365 = sld [smem:[#allocation6 + $0x5e]]
        %v1366 = vstv %s1364
        %v1367 = vmul.f32 %v1366, %v1150
        %v1368 = vmul.f32 %v1366, %v1145
        %v1369 = vmul.f32 %v1366, %v1151
        %1373 = vrot.lane.b32.xlu0 %v1367, 32
        %v1374 = vpop.permute.xlu0 %1373
        %1375 = vrot.lane.b32.xlu0 %v1368, 32
        %v1376 = vpop.permute.xlu0 %1375
        %1377 = vrot.lane.b32.xlu0 %v1369, 32
        %v1378 = vpop.permute.xlu0 %1377
        %v1379 = vsel %vm512, %v1374, %v1376
        %v1380 = vsel %vm512, %v1376, %v1378
        %v1383 = vadd.f32 %v1299, %v1379
        %v1384 = vadd.f32 %v1300, %v1380
        %v1385 = vstv %s1365
        %v1386 = vmul.f32 %v1385, %v1166
        %v1387 = vmul.f32 %v1385, %v1161
        %v1388 = vmul.f32 %v1385, %v1167
        %1392 = vrot.lane.b32.xlu0 %v1386, 32
        %v1393 = vpop.permute.xlu0 %1392
        %1394 = vrot.lane.b32.xlu0 %v1387, 32
        %v1395 = vpop.permute.xlu0 %1394
        %1396 = vrot.lane.b32.xlu0 %v1388, 32
        %v1397 = vpop.permute.xlu0 %1396
        %v1398 = vsel %vm512, %v1393, %v1395
        %v1399 = vsel %vm512, %v1395, %v1397
        %v1402 = vadd.f32 %v1318, %v1398
        %v1403 = vadd.f32 %v1319, %v1399
        %s1404 = scalar_lea.vmem [#allocation7], 4
        %v1405 = vld [vmem:[%s1404] ss:$8 sm:$0x3]
        %v1407 = vperm.slane %v1405, 0
        %v1408 = vperm.slane %v1405, 1
        %1409 = vrot.lane.b32.xlu0 %v1407, 4
        %v1410 = vpop.permute.xlu0 %1409
        %1411 = vrot.lane.b32.xlu0 %v1408, 4
        %v1412 = vpop.permute.xlu0 %1411
        %vm1413 = vcmask 31744
        %v1414 = vsel %vm1413, %v1410, %v1412
        %v1418 = vmul.f32 %v249, %v1410
        %v1419 = vmul.f32 %v245, %v1414
        %v1420 = vmul.f32 %v250, %v1412
        %v1421 = vmul.f32 %v262, %v1410
        %v1422 = vmul.f32 %v258, %v1414
        %v1423 = vmul.f32 %v263, %v1412
        %1427 = vrot.lane.b32.xlu0 %v1418, 44
        %v1428 = vpop.permute.xlu0 %1427
        %1429 = vrot.lane.b32.xlu0 %v1419, 44
        %v1430 = vpop.permute.xlu0 %1429
        %1431 = vrot.lane.b32.xlu0 %v1420, 44
        %v1432 = vpop.permute.xlu0 %1431
        %vm1433 = vcmask 359424
        %v1434 = vsel %vm1433, %v1428, %v1430
        %v1435 = vsel %vm1433, %v1430, %v1432
        %v1439 = vsel %vm280, 0.0, %v1428
        %v1440 = vsel %vm280, %v1435, 0.0
        %1444 = vrot.lane.b32.xlu0 %v1421, 44
        %v1445 = vpop.permute.xlu0 %1444
        %1446 = vrot.lane.b32.xlu0 %v1422, 44
        %v1447 = vpop.permute.xlu0 %1446
        %1448 = vrot.lane.b32.xlu0 %v1423, 44
        %v1449 = vpop.permute.xlu0 %1448
        %v1450 = vsel %vm1433, %v1445, %v1447
        %v1451 = vsel %vm1433, %v1447, %v1449
        %v1455 = vsel %vm280, 0.0, %v1445
        %v1456 = vsel %vm280, %v1451, 0.0
        %s1457 = sld [smem:[#allocation6 + $0x4]]
        %s1458 = sld [smem:[#allocation6 + $0x35]]
        %v1459 = vstv %s1457
        %v1460 = vmul.f32 %v1459, %v1439
        %v1461 = vmul.f32 %v1459, %v1434
        %v1462 = vadd.f32 %v1383, %v1460
        %v1463 = vadd.f32 %v1384, %v1461
        %v1464 = vstv %s1458
        %v1465 = vmul.f32 %v1464, %v1455
        %v1466 = vmul.f32 %v1464, %v1450
        %v1467 = vadd.f32 %v1402, %v1465
        %v1468 = vadd.f32 %v1403, %v1466
        %s1469 = sld [smem:[#allocation6 + $0xb]]
        %s1470 = sld [smem:[#allocation6 + $0x3c]]
        %v1471 = vstv %s1469
        %v1472 = vmul.f32 %v1471, %v1439
        %v1473 = vmul.f32 %v1471, %v1434
        %v1474 = vmul.f32 %v1471, %v1440
        %v1475 = vadd.f32 %v1340, %v1472
        %v1476 = vadd.f32 %v1341, %v1473
        %v1477 = vadd.f32 %v1342, %v1474
        %v1478 = vstv %s1470
        %v1479 = vmul.f32 %v1478, %v1455
        %v1480 = vmul.f32 %v1478, %v1450
        %v1481 = vmul.f32 %v1478, %v1456
        %v1482 = vadd.f32 %v1361, %v1479
        %v1483 = vadd.f32 %v1362, %v1480
        %v1484 = vadd.f32 %v1363, %v1481
        %s1485 = sld [smem:[#allocation6 + $0x12]]
        %s1486 = sld [smem:[#allocation6 + $0x43]]
        %v1487 = vstv %s1485
        %v1488 = vmul.f32 %v1487, %v1439
        %v1489 = vmul.f32 %v1487, %v1434
        %v1490 = vmul.f32 %v1487, %v1440
        %1494 = vrot.lane.b32.xlu0 %v1488, 96
        %v1495 = vpop.permute.xlu0 %1494
        %1496 = vrot.lane.b32.xlu0 %v1489, 96
        %v1497 = vpop.permute.xlu0 %1496
        %1498 = vrot.lane.b32.xlu0 %v1490, 96
        %v1499 = vpop.permute.xlu0 %1498
        %v1500 = vsel %vm342, %v1495, %v1497
        %v1501 = vsel %vm342, %v1497, %v1499
        %v1504 = vadd.f32 %v1462, %v1500
        %v1505 = vadd.f32 %v1463, %v1501
        %v1506 = vstv %s1486
        %v1507 = vmul.f32 %v1506, %v1455
        %v1508 = vmul.f32 %v1506, %v1450
        %v1509 = vmul.f32 %v1506, %v1456
        %1513 = vrot.lane.b32.xlu0 %v1507, 96
        %v1514 = vpop.permute.xlu0 %1513
        %1515 = vrot.lane.b32.xlu0 %v1508, 96
        %v1516 = vpop.permute.xlu0 %1515
        %1517 = vrot.lane.b32.xlu0 %v1509, 96
        %v1518 = vpop.permute.xlu0 %1517
        %v1519 = vsel %vm342, %v1514, %v1516
        %v1520 = vsel %vm342, %v1516, %v1518
        %v1523 = vadd.f32 %v1467, %v1519
        %v1524 = vadd.f32 %v1468, %v1520
        %s1525 = sld [smem:[#allocation6 + $0x19]]
        %s1526 = sld [smem:[#allocation6 + $0x4a]]
        %v1527 = vstv %s1525
        %v1528 = vmul.f32 %v1527, %v1439
        %v1529 = vmul.f32 %v1527, %v1434
        %v1530 = vmul.f32 %v1527, %v1440
        %1534 = vrot.lane.b32.xlu0 %v1528, 96
        %v1535 = vpop.permute.xlu0 %1534
        %1536 = vrot.lane.b32.xlu0 %v1529, 96
        %v1537 = vpop.permute.xlu0 %1536
        %1538 = vrot.lane.b32.xlu0 %v1530, 96
        %v1539 = vpop.permute.xlu0 %1538
        %v1540 = vsel %vm342, %v1535, %v1537
        %v1541 = vsel %vm342, %v1537, %v1539
        %v1545 = vadd.f32 %v1475, %v1540
        %v1546 = vadd.f32 %v1476, %v1541
        %v1547 = vadd.f32 %v1477, %v1539
        %v1548 = vstv %s1526
        %v1549 = vmul.f32 %v1548, %v1455
        %v1550 = vmul.f32 %v1548, %v1450
        %v1551 = vmul.f32 %v1548, %v1456
        %1555 = vrot.lane.b32.xlu0 %v1549, 96
        %v1556 = vpop.permute.xlu0 %1555
        %1557 = vrot.lane.b32.xlu0 %v1550, 96
        %v1558 = vpop.permute.xlu0 %1557
        %1559 = vrot.lane.b32.xlu0 %v1551, 96
        %v1560 = vpop.permute.xlu0 %1559
        %v1561 = vsel %vm342, %v1556, %v1558
        %v1562 = vsel %vm342, %v1558, %v1560
        %v1566 = vadd.f32 %v1482, %v1561
        %v1567 = vadd.f32 %v1483, %v1562
        %v1568 = vadd.f32 %v1484, %v1560
        %s1569 = sld [smem:[#allocation6 + $0x20]]
        %s1570 = sld [smem:[#allocation6 + $0x51]]
        %v1571 = vstv %s1569
        %v1572 = vmul.f32 %v1571, %v1439
        %v1573 = vmul.f32 %v1571, %v1434
        %v1574 = vmul.f32 %v1571, %v1440
        %1578 = vrot.lane.b32.xlu0 %v1572, 64
        %v1579 = vpop.permute.xlu0 %1578
        %1580 = vrot.lane.b32.xlu0 %v1573, 64
        %v1581 = vpop.permute.xlu0 %1580
        %1582 = vrot.lane.b32.xlu0 %v1574, 64
        %v1583 = vpop.permute.xlu0 %1582
        %v1584 = vsel %vm427, %v1579, %v1581
        %v1585 = vsel %vm427, %v1581, %v1583
        %v1588 = vadd.f32 %v1504, %v1584
        %v1589 = vadd.f32 %v1505, %v1585
        %v1590 = vstv %s1570
        %v1591 = vmul.f32 %v1590, %v1455
        %v1592 = vmul.f32 %v1590, %v1450
        %v1593 = vmul.f32 %v1590, %v1456
        %1597 = vrot.lane.b32.xlu0 %v1591, 64
        %v1598 = vpop.permute.xlu0 %1597
        %1599 = vrot.lane.b32.xlu0 %v1592, 64
        %v1600 = vpop.permute.xlu0 %1599
        %1601 = vrot.lane.b32.xlu0 %v1593, 64
        %v1602 = vpop.permute.xlu0 %1601
        %v1603 = vsel %vm427, %v1598, %v1600
        %v1604 = vsel %vm427, %v1600, %v1602
        %v1607 = vadd.f32 %v1523, %v1603
        %v1608 = vadd.f32 %v1524, %v1604
        %s1609 = sld [smem:[#allocation6 + $0x27]]
        %s1610 = sld [smem:[#allocation6 + $0x58]]
        %v1611 = vstv %s1609
        %v1612 = vmul.f32 %v1611, %v1439
        %v1613 = vmul.f32 %v1611, %v1434
        %v1614 = vmul.f32 %v1611, %v1440
        %1618 = vrot.lane.b32.xlu0 %v1612, 64
        %v1619 = vpop.permute.xlu0 %1618
        %1620 = vrot.lane.b32.xlu0 %v1613, 64
        %v1621 = vpop.permute.xlu0 %1620
        %1622 = vrot.lane.b32.xlu0 %v1614, 64
        %v1623 = vpop.permute.xlu0 %1622
        %v1624 = vsel %vm427, %v1619, %v1621
        %v1625 = vsel %vm427, %v1621, %v1623
        %v1629 = vadd.f32 %v1545, %v1624
        %v1630 = vadd.f32 %v1546, %v1625
        %v1631 = vadd.f32 %v1547, %v1623
        %v1632 = vstv %s1610
        %v1633 = vmul.f32 %v1632, %v1455
        %v1634 = vmul.f32 %v1632, %v1450
        %v1635 = vmul.f32 %v1632, %v1456
        %1639 = vrot.lane.b32.xlu0 %v1633, 64
        %v1640 = vpop.permute.xlu0 %1639
        %1641 = vrot.lane.b32.xlu0 %v1634, 64
        %v1642 = vpop.permute.xlu0 %1641
        %1643 = vrot.lane.b32.xlu0 %v1635, 64
        %v1644 = vpop.permute.xlu0 %1643
        %v1645 = vsel %vm427, %v1640, %v1642
        %v1646 = vsel %vm427, %v1642, %v1644
        %v1650 = vadd.f32 %v1566, %v1645
        %v1651 = vadd.f32 %v1567, %v1646
        %v1652 = vadd.f32 %v1568, %v1644
        %s1653 = sld [smem:[#allocation6 + $0x2e]]
        %s1654 = sld [smem:[#allocation6 + $0x5f]]
        %v1655 = vstv %s1653
        %v1656 = vmul.f32 %v1655, %v1439
        %v1657 = vmul.f32 %v1655, %v1434
        %v1658 = vmul.f32 %v1655, %v1440
        %1662 = vrot.lane.b32.xlu0 %v1656, 32
        %v1663 = vpop.permute.xlu0 %1662
        %1664 = vrot.lane.b32.xlu0 %v1657, 32
        %v1665 = vpop.permute.xlu0 %1664
        %1666 = vrot.lane.b32.xlu0 %v1658, 32
        %v1667 = vpop.permute.xlu0 %1666
        %v1668 = vsel %vm512, %v1663, %v1665
        %v1669 = vsel %vm512, %v1665, %v1667
        %v1672 = vadd.f32 %v1588, %v1668
        %v1673 = vadd.f32 %v1589, %v1669
        %v1674 = vstv %s1654
        %v1675 = vmul.f32 %v1674, %v1455
        %v1676 = vmul.f32 %v1674, %v1450
        %v1677 = vmul.f32 %v1674, %v1456
        %1681 = vrot.lane.b32.xlu0 %v1675, 32
        %v1682 = vpop.permute.xlu0 %1681
        %1683 = vrot.lane.b32.xlu0 %v1676, 32
        %v1684 = vpop.permute.xlu0 %1683
        %1685 = vrot.lane.b32.xlu0 %v1677, 32
        %v1686 = vpop.permute.xlu0 %1685
        %v1687 = vsel %vm512, %v1682, %v1684
        %v1688 = vsel %vm512, %v1684, %v1686
        %v1691 = vadd.f32 %v1607, %v1687
        %v1692 = vadd.f32 %v1608, %v1688
        %s1693 = scalar_lea.vmem [#allocation7], 5
        %v1694 = vld [vmem:[%s1693] ss:$8 sm:$0x3]
        %v1696 = vperm.slane %v1694, 0
        %v1697 = vperm.slane %v1694, 1
        %1698 = vrot.lane.b32.xlu0 %v1696, 5
        %v1699 = vpop.permute.xlu0 %1698
        %1700 = vrot.lane.b32.xlu0 %v1697, 5
        %v1701 = vpop.permute.xlu0 %1700
        %vm1702 = vcmask 39936
        %v1703 = vsel %vm1702, %v1699, %v1701
        %v1707 = vmul.f32 %v249, %v1699
        %v1708 = vmul.f32 %v245, %v1703
        %v1709 = vmul.f32 %v250, %v1701
        %v1710 = vmul.f32 %v262, %v1699
        %v1711 = vmul.f32 %v258, %v1703
        %v1712 = vmul.f32 %v263, %v1701
        %1716 = vrot.lane.b32.xlu0 %v1707, 43
        %v1717 = vpop.permute.xlu0 %1716
        %1718 = vrot.lane.b32.xlu0 %v1708, 43
        %v1719 = vpop.permute.xlu0 %1718
        %1720 = vrot.lane.b32.xlu0 %v1709, 43
        %v1721 = vpop.permute.xlu0 %1720
        %vm1722 = vcmask 351232
        %v1723 = vsel %vm1722, %v1717, %v1719
        %v1724 = vsel %vm1722, %v1719, %v1721
        %v1728 = vsel %vm280, 0.0, %v1717
        %v1729 = vsel %vm280, %v1724, 0.0
        %1733 = vrot.lane.b32.xlu0 %v1710, 43
        %v1734 = vpop.permute.xlu0 %1733
        %1735 = vrot.lane.b32.xlu0 %v1711, 43
        %v1736 = vpop.permute.xlu0 %1735
        %1737 = vrot.lane.b32.xlu0 %v1712, 43
        %v1738 = vpop.permute.xlu0 %1737
        %v1739 = vsel %vm1722, %v1734, %v1736
        %v1740 = vsel %vm1722, %v1736, %v1738
        %v1744 = vsel %vm280, 0.0, %v1734
        %v1745 = vsel %vm280, %v1740, 0.0
        %s1746 = sld [smem:[#allocation6 + $0x5]]
        %s1747 = sld [smem:[#allocation6 + $0x36]]
        %v1748 = vstv %s1746
        %v1749 = vmul.f32 %v1748, %v1728
        %v1750 = vmul.f32 %v1748, %v1723
        %v1751 = vadd.f32 %v1672, %v1749
        %v1752 = vadd.f32 %v1673, %v1750
        %v1753 = vstv %s1747
        %v1754 = vmul.f32 %v1753, %v1744
        %v1755 = vmul.f32 %v1753, %v1739
        %v1756 = vadd.f32 %v1691, %v1754
        %v1757 = vadd.f32 %v1692, %v1755
        %s1758 = sld [smem:[#allocation6 + $0xc]]
        %s1759 = sld [smem:[#allocation6 + $0x3d]]
        %v1760 = vstv %s1758
        %v1761 = vmul.f32 %v1760, %v1728
        %v1762 = vmul.f32 %v1760, %v1723
        %v1763 = vmul.f32 %v1760, %v1729
        %v1764 = vadd.f32 %v1629, %v1761
        %v1765 = vadd.f32 %v1630, %v1762
        %v1766 = vadd.f32 %v1631, %v1763
        %v1767 = vstv %s1759
        %v1768 = vmul.f32 %v1767, %v1744
        %v1769 = vmul.f32 %v1767, %v1739
        %v1770 = vmul.f32 %v1767, %v1745
        %v1771 = vadd.f32 %v1650, %v1768
        %v1772 = vadd.f32 %v1651, %v1769
        %v1773 = vadd.f32 %v1652, %v1770
        %s1774 = sld [smem:[#allocation6 + $0x13]]
        %s1775 = sld [smem:[#allocation6 + $0x44]]
        %v1776 = vstv %s1774
        %v1777 = vmul.f32 %v1776, %v1728
        %v1778 = vmul.f32 %v1776, %v1723
        %v1779 = vmul.f32 %v1776, %v1729
        %1783 = vrot.lane.b32.xlu0 %v1777, 96
        %v1784 = vpop.permute.xlu0 %1783
        %1785 = vrot.lane.b32.xlu0 %v1778, 96
        %v1786 = vpop.permute.xlu0 %1785
        %1787 = vrot.lane.b32.xlu0 %v1779, 96
        %v1788 = vpop.permute.xlu0 %1787
        %v1789 = vsel %vm342, %v1784, %v1786
        %v1790 = vsel %vm342, %v1786, %v1788
        %v1793 = vadd.f32 %v1751, %v1789
        %v1794 = vadd.f32 %v1752, %v1790
        %v1795 = vstv %s1775
        %v1796 = vmul.f32 %v1795, %v1744
        %v1797 = vmul.f32 %v1795, %v1739
        %v1798 = vmul.f32 %v1795, %v1745
        %1802 = vrot.lane.b32.xlu0 %v1796, 96
        %v1803 = vpop.permute.xlu0 %1802
        %1804 = vrot.lane.b32.xlu0 %v1797, 96
        %v1805 = vpop.permute.xlu0 %1804
        %1806 = vrot.lane.b32.xlu0 %v1798, 96
        %v1807 = vpop.permute.xlu0 %1806
        %v1808 = vsel %vm342, %v1803, %v1805
        %v1809 = vsel %vm342, %v1805, %v1807
        %v1812 = vadd.f32 %v1756, %v1808
        %v1813 = vadd.f32 %v1757, %v1809
        %s1814 = sld [smem:[#allocation6 + $0x1a]]
        %s1815 = sld [smem:[#allocation6 + $0x4b]]
        %v1816 = vstv %s1814
        %v1817 = vmul.f32 %v1816, %v1728
        %v1818 = vmul.f32 %v1816, %v1723
        %v1819 = vmul.f32 %v1816, %v1729
        %1823 = vrot.lane.b32.xlu0 %v1817, 96
        %v1824 = vpop.permute.xlu0 %1823
        %1825 = vrot.lane.b32.xlu0 %v1818, 96
        %v1826 = vpop.permute.xlu0 %1825
        %1827 = vrot.lane.b32.xlu0 %v1819, 96
        %v1828 = vpop.permute.xlu0 %1827
        %v1829 = vsel %vm342, %v1824, %v1826
        %v1830 = vsel %vm342, %v1826, %v1828
        %v1834 = vadd.f32 %v1764, %v1829
        %v1835 = vadd.f32 %v1765, %v1830
        %v1836 = vadd.f32 %v1766, %v1828
        %v1837 = vstv %s1815
        %v1838 = vmul.f32 %v1837, %v1744
        %v1839 = vmul.f32 %v1837, %v1739
        %v1840 = vmul.f32 %v1837, %v1745
        %1844 = vrot.lane.b32.xlu0 %v1838, 96
        %v1845 = vpop.permute.xlu0 %1844
        %1846 = vrot.lane.b32.xlu0 %v1839, 96
        %v1847 = vpop.permute.xlu0 %1846
        %1848 = vrot.lane.b32.xlu0 %v1840, 96
        %v1849 = vpop.permute.xlu0 %1848
        %v1850 = vsel %vm342, %v1845, %v1847
        %v1851 = vsel %vm342, %v1847, %v1849
        %v1855 = vadd.f32 %v1771, %v1850
        %v1856 = vadd.f32 %v1772, %v1851
        %v1857 = vadd.f32 %v1773, %v1849
        %s1858 = sld [smem:[#allocation6 + $0x21]]
        %s1859 = sld [smem:[#allocation6 + $0x52]]
        %v1860 = vstv %s1858
        %v1861 = vmul.f32 %v1860, %v1728
        %v1862 = vmul.f32 %v1860, %v1723
        %v1863 = vmul.f32 %v1860, %v1729
        %1867 = vrot.lane.b32.xlu0 %v1861, 64
        %v1868 = vpop.permute.xlu0 %1867
        %1869 = vrot.lane.b32.xlu0 %v1862, 64
        %v1870 = vpop.permute.xlu0 %1869
        %1871 = vrot.lane.b32.xlu0 %v1863, 64
        %v1872 = vpop.permute.xlu0 %1871
        %v1873 = vsel %vm427, %v1868, %v1870
        %v1874 = vsel %vm427, %v1870, %v1872
        %v1877 = vadd.f32 %v1793, %v1873
        %v1878 = vadd.f32 %v1794, %v1874
        %v1879 = vstv %s1859
        %v1880 = vmul.f32 %v1879, %v1744
        %v1881 = vmul.f32 %v1879, %v1739
        %v1882 = vmul.f32 %v1879, %v1745
        %1886 = vrot.lane.b32.xlu0 %v1880, 64
        %v1887 = vpop.permute.xlu0 %1886
        %1888 = vrot.lane.b32.xlu0 %v1881, 64
        %v1889 = vpop.permute.xlu0 %1888
        %1890 = vrot.lane.b32.xlu0 %v1882, 64
        %v1891 = vpop.permute.xlu0 %1890
        %v1892 = vsel %vm427, %v1887, %v1889
        %v1893 = vsel %vm427, %v1889, %v1891
        %v1896 = vadd.f32 %v1812, %v1892
        %v1897 = vadd.f32 %v1813, %v1893
        %s1898 = sld [smem:[#allocation6 + $0x28]]
        %s1899 = sld [smem:[#allocation6 + $0x59]]
        %v1900 = vstv %s1898
        %v1901 = vmul.f32 %v1900, %v1728
        %v1902 = vmul.f32 %v1900, %v1723
        %v1903 = vmul.f32 %v1900, %v1729
        %1907 = vrot.lane.b32.xlu0 %v1901, 64
        %v1908 = vpop.permute.xlu0 %1907
        %1909 = vrot.lane.b32.xlu0 %v1902, 64
        %v1910 = vpop.permute.xlu0 %1909
        %1911 = vrot.lane.b32.xlu0 %v1903, 64
        %v1912 = vpop.permute.xlu0 %1911
        %v1913 = vsel %vm427, %v1908, %v1910
        %v1914 = vsel %vm427, %v1910, %v1912
        %v1918 = vadd.f32 %v1834, %v1913
        %v1919 = vadd.f32 %v1835, %v1914
        %v1920 = vadd.f32 %v1836, %v1912
        %v1921 = vstv %s1899
        %v1922 = vmul.f32 %v1921, %v1744
        %v1923 = vmul.f32 %v1921, %v1739
        %v1924 = vmul.f32 %v1921, %v1745
        %1928 = vrot.lane.b32.xlu0 %v1922, 64
        %v1929 = vpop.permute.xlu0 %1928
        %1930 = vrot.lane.b32.xlu0 %v1923, 64
        %v1931 = vpop.permute.xlu0 %1930
        %1932 = vrot.lane.b32.xlu0 %v1924, 64
        %v1933 = vpop.permute.xlu0 %1932
        %v1934 = vsel %vm427, %v1929, %v1931
        %v1935 = vsel %vm427, %v1931, %v1933
        %v1939 = vadd.f32 %v1855, %v1934
        %v1940 = vadd.f32 %v1856, %v1935
        %v1941 = vadd.f32 %v1857, %v1933
        %s1942 = sld [smem:[#allocation6 + $0x2f]]
        %s1943 = sld [smem:[#allocation6 + $0x60]]
        %v1944 = vstv %s1942
        %v1945 = vmul.f32 %v1944, %v1728
        %v1946 = vmul.f32 %v1944, %v1723
        %v1947 = vmul.f32 %v1944, %v1729
        %1951 = vrot.lane.b32.xlu0 %v1945, 32
        %v1952 = vpop.permute.xlu0 %1951
        %1953 = vrot.lane.b32.xlu0 %v1946, 32
        %v1954 = vpop.permute.xlu0 %1953
        %1955 = vrot.lane.b32.xlu0 %v1947, 32
        %v1956 = vpop.permute.xlu0 %1955
        %v1957 = vsel %vm512, %v1952, %v1954
        %v1958 = vsel %vm512, %v1954, %v1956
        %v1961 = vadd.f32 %v1877, %v1957
        %v1962 = vadd.f32 %v1878, %v1958
        %v1963 = vstv %s1943
        %v1964 = vmul.f32 %v1963, %v1744
        %v1965 = vmul.f32 %v1963, %v1739
        %v1966 = vmul.f32 %v1963, %v1745
        %1970 = vrot.lane.b32.xlu0 %v1964, 32
        %v1971 = vpop.permute.xlu0 %1970
        %1972 = vrot.lane.b32.xlu0 %v1965, 32
        %v1973 = vpop.permute.xlu0 %1972
        %1974 = vrot.lane.b32.xlu0 %v1966, 32
        %v1975 = vpop.permute.xlu0 %1974
        %v1976 = vsel %vm512, %v1971, %v1973
        %v1977 = vsel %vm512, %v1973, %v1975
        %v1980 = vadd.f32 %v1896, %v1976
        %v1981 = vadd.f32 %v1897, %v1977
        %s1982 = scalar_lea.vmem [#allocation7], 6
        %v1983 = vld [vmem:[%s1982] ss:$8 sm:$0x3]
        %v1985 = vperm.slane %v1983, 0
        %v1986 = vperm.slane %v1983, 1
        %1987 = vrot.lane.b32.xlu0 %v1985, 6
        %v1988 = vpop.permute.xlu0 %1987
        %1989 = vrot.lane.b32.xlu0 %v1986, 6
        %v1990 = vpop.permute.xlu0 %1989
        %vm1991 = vcmask 48128
        %v1992 = vsel %vm1991, %v1988, %v1990
        %v1996 = vmul.f32 %v249, %v1988
        %v1997 = vmul.f32 %v245, %v1992
        %v1998 = vmul.f32 %v250, %v1990
        %v1999 = vmul.f32 %v262, %v1988
        %v2000 = vmul.f32 %v258, %v1992
        %v2001 = vmul.f32 %v263, %v1990
        %2005 = vrot.lane.b32.xlu0 %v1996, 42
        %v2006 = vpop.permute.xlu0 %2005
        %2007 = vrot.lane.b32.xlu0 %v1997, 42
        %v2008 = vpop.permute.xlu0 %2007
        %2009 = vrot.lane.b32.xlu0 %v1998, 42
        %v2010 = vpop.permute.xlu0 %2009
        %vm2011 = vcmask 343040
        %v2012 = vsel %vm2011, %v2006, %v2008
        %v2013 = vsel %vm2011, %v2008, %v2010
        %v2017 = vsel %vm280, 0.0, %v2006
        %v2018 = vsel %vm280, %v2013, 0.0
        %2022 = vrot.lane.b32.xlu0 %v1999, 42
        %v2023 = vpop.permute.xlu0 %2022
        %2024 = vrot.lane.b32.xlu0 %v2000, 42
        %v2025 = vpop.permute.xlu0 %2024
        %2026 = vrot.lane.b32.xlu0 %v2001, 42
        %v2027 = vpop.permute.xlu0 %2026
        %v2028 = vsel %vm2011, %v2023, %v2025
        %v2029 = vsel %vm2011, %v2025, %v2027
        %v2033 = vsel %vm280, 0.0, %v2023
        %v2034 = vsel %vm280, %v2029, 0.0
        %s2035 = sld [smem:[#allocation6 + $0x6]]
        %s2036 = sld [smem:[#allocation6 + $0x37]]
        %v2037 = vstv %s2035
        %v2038 = vmul.f32 %v2037, %v2017
        %v2039 = vmul.f32 %v2037, %v2012
        %v2040 = vadd.f32 %v1961, %v2038
        %v2041 = vadd.f32 %v1962, %v2039
        %v2042 = vstv %s2036
        %v2043 = vmul.f32 %v2042, %v2033
        %v2044 = vmul.f32 %v2042, %v2028
        %v2045 = vadd.f32 %v1980, %v2043
        %v2046 = vadd.f32 %v1981, %v2044
        %s2047 = sld [smem:[#allocation6 + $0xd]]
        %s2048 = sld [smem:[#allocation6 + $0x3e]]
        %v2049 = vstv %s2047
        %v2050 = vmul.f32 %v2049, %v2017
        %v2051 = vmul.f32 %v2049, %v2012
        %v2052 = vmul.f32 %v2049, %v2018
        %v2053 = vadd.f32 %v1918, %v2050
        %v2054 = vadd.f32 %v1919, %v2051
        %v2055 = vadd.f32 %v1920, %v2052
        %v2056 = vstv %s2048
        %v2057 = vmul.f32 %v2056, %v2033
        %v2058 = vmul.f32 %v2056, %v2028
        %v2059 = vmul.f32 %v2056, %v2034
        %v2060 = vadd.f32 %v1939, %v2057
        %v2061 = vadd.f32 %v1940, %v2058
        %v2062 = vadd.f32 %v1941, %v2059
        %s2063 = sld [smem:[#allocation6 + $0x14]]
        %s2064 = sld [smem:[#allocation6 + $0x45]]
        %v2065 = vstv %s2063
        %v2066 = vmul.f32 %v2065, %v2017
        %v2067 = vmul.f32 %v2065, %v2012
        %v2068 = vmul.f32 %v2065, %v2018
        %2072 = vrot.lane.b32.xlu0 %v2066, 96
        %v2073 = vpop.permute.xlu0 %2072
        %2074 = vrot.lane.b32.xlu0 %v2067, 96
        %v2075 = vpop.permute.xlu0 %2074
        %2076 = vrot.lane.b32.xlu0 %v2068, 96
        %v2077 = vpop.permute.xlu0 %2076
        %v2078 = vsel %vm342, %v2073, %v2075
        %v2079 = vsel %vm342, %v2075, %v2077
        %v2082 = vadd.f32 %v2040, %v2078
        %v2083 = vadd.f32 %v2041, %v2079
        %v2084 = vstv %s2064
        %v2085 = vmul.f32 %v2084, %v2033
        %v2086 = vmul.f32 %v2084, %v2028
        %v2087 = vmul.f32 %v2084, %v2034
        %2091 = vrot.lane.b32.xlu0 %v2085, 96
        %v2092 = vpop.permute.xlu0 %2091
        %2093 = vrot.lane.b32.xlu0 %v2086, 96
        %v2094 = vpop.permute.xlu0 %2093
        %2095 = vrot.lane.b32.xlu0 %v2087, 96
        %v2096 = vpop.permute.xlu0 %2095
        %v2097 = vsel %vm342, %v2092, %v2094
        %v2098 = vsel %vm342, %v2094, %v2096
        %v2101 = vadd.f32 %v2045, %v2097
        %v2102 = vadd.f32 %v2046, %v2098
        %s2103 = sld [smem:[#allocation6 + $0x1b]]
        %s2104 = sld [smem:[#allocation6 + $0x4c]]
        %v2105 = vstv %s2103
        %v2106 = vmul.f32 %v2105, %v2017
        %v2107 = vmul.f32 %v2105, %v2012
        %v2108 = vmul.f32 %v2105, %v2018
        %2112 = vrot.lane.b32.xlu0 %v2106, 96
        %v2113 = vpop.permute.xlu0 %2112
        %2114 = vrot.lane.b32.xlu0 %v2107, 96
        %v2115 = vpop.permute.xlu0 %2114
        %2116 = vrot.lane.b32.xlu0 %v2108, 96
        %v2117 = vpop.permute.xlu0 %2116
        %v2118 = vsel %vm342, %v2113, %v2115
        %v2119 = vsel %vm342, %v2115, %v2117
        %v2123 = vadd.f32 %v2053, %v2118
        %v2124 = vadd.f32 %v2054, %v2119
        %v2125 = vadd.f32 %v2055, %v2117
        %v2126 = vstv %s2104
        %v2127 = vmul.f32 %v2126, %v2033
        %v2128 = vmul.f32 %v2126, %v2028
        %v2129 = vmul.f32 %v2126, %v2034
        %2133 = vrot.lane.b32.xlu0 %v2127, 96
        %v2134 = vpop.permute.xlu0 %2133
        %2135 = vrot.lane.b32.xlu0 %v2128, 96
        %v2136 = vpop.permute.xlu0 %2135
        %2137 = vrot.lane.b32.xlu0 %v2129, 96
        %v2138 = vpop.permute.xlu0 %2137
        %v2139 = vsel %vm342, %v2134, %v2136
        %v2140 = vsel %vm342, %v2136, %v2138
        %v2144 = vadd.f32 %v2060, %v2139
        %v2145 = vadd.f32 %v2061, %v2140
        %v2146 = vadd.f32 %v2062, %v2138
        %s2147 = sld [smem:[#allocation6 + $0x22]]
        %s2148 = sld [smem:[#allocation6 + $0x53]]
        %v2149 = vstv %s2147
        %v2150 = vmul.f32 %v2149, %v2017
        %v2151 = vmul.f32 %v2149, %v2012
        %v2152 = vmul.f32 %v2149, %v2018
        %2156 = vrot.lane.b32.xlu0 %v2150, 64
        %v2157 = vpop.permute.xlu0 %2156
        %2158 = vrot.lane.b32.xlu0 %v2151, 64
        %v2159 = vpop.permute.xlu0 %2158
        %2160 = vrot.lane.b32.xlu0 %v2152, 64
        %v2161 = vpop.permute.xlu0 %2160
        %v2162 = vsel %vm427, %v2157, %v2159
        %v2163 = vsel %vm427, %v2159, %v2161
        %v2166 = vadd.f32 %v2082, %v2162
        %v2167 = vadd.f32 %v2083, %v2163
        %v2168 = vstv %s2148
        %v2169 = vmul.f32 %v2168, %v2033
        %v2170 = vmul.f32 %v2168, %v2028
        %v2171 = vmul.f32 %v2168, %v2034
        %2175 = vrot.lane.b32.xlu0 %v2169, 64
        %v2176 = vpop.permute.xlu0 %2175
        %2177 = vrot.lane.b32.xlu0 %v2170, 64
        %v2178 = vpop.permute.xlu0 %2177
        %2179 = vrot.lane.b32.xlu0 %v2171, 64
        %v2180 = vpop.permute.xlu0 %2179
        %v2181 = vsel %vm427, %v2176, %v2178
        %v2182 = vsel %vm427, %v2178, %v2180
        %v2185 = vadd.f32 %v2101, %v2181
        %v2186 = vadd.f32 %v2102, %v2182
        %s2187 = sld [smem:[#allocation6 + $0x29]]
        %s2188 = sld [smem:[#allocation6 + $0x5a]]
        %v2189 = vstv %s2187
        %v2190 = vmul.f32 %v2189, %v2017
        %v2191 = vmul.f32 %v2189, %v2012
        %v2192 = vmul.f32 %v2189, %v2018
        %2196 = vrot.lane.b32.xlu0 %v2190, 64
        %v2197 = vpop.permute.xlu0 %2196
        %2198 = vrot.lane.b32.xlu0 %v2191, 64
        %v2199 = vpop.permute.xlu0 %2198
        %2200 = vrot.lane.b32.xlu0 %v2192, 64
        %v2201 = vpop.permute.xlu0 %2200
        %v2202 = vsel %vm427, %v2197, %v2199
        %v2203 = vsel %vm427, %v2199, %v2201
        %v2207 = vadd.f32 %v2123, %v2202
        %v2208 = vadd.f32 %v2124, %v2203
        %v2209 = vadd.f32 %v2125, %v2201
        %v2210 = vstv %s2188
        %v2211 = vmul.f32 %v2210, %v2033
        %v2212 = vmul.f32 %v2210, %v2028
        %v2213 = vmul.f32 %v2210, %v2034
        %2217 = vrot.lane.b32.xlu0 %v2211, 64
        %v2218 = vpop.permute.xlu0 %2217
        %2219 = vrot.lane.b32.xlu0 %v2212, 64
        %v2220 = vpop.permute.xlu0 %2219
        %2221 = vrot.lane.b32.xlu0 %v2213, 64
        %v2222 = vpop.permute.xlu0 %2221
        %v2223 = vsel %vm427, %v2218, %v2220
        %v2224 = vsel %vm427, %v2220, %v2222
        %v2228 = vadd.f32 %v2144, %v2223
        %v2229 = vadd.f32 %v2145, %v2224
        %v2230 = vadd.f32 %v2146, %v2222
        %s2231 = sld [smem:[#allocation6 + $0x30]]
        %s2232 = sld [smem:[#allocation6 + $0x61]]
        %v2233 = vstv %s2231
        %v2234 = vmul.f32 %v2233, %v2017
        %v2235 = vmul.f32 %v2233, %v2012
        %v2236 = vmul.f32 %v2233, %v2018
        %2240 = vrot.lane.b32.xlu0 %v2234, 32
        %v2241 = vpop.permute.xlu0 %2240
        %2242 = vrot.lane.b32.xlu0 %v2235, 32
        %v2243 = vpop.permute.xlu0 %2242
        %2244 = vrot.lane.b32.xlu0 %v2236, 32
        %v2245 = vpop.permute.xlu0 %2244
        %v2246 = vsel %vm512, %v2241, %v2243
        %v2247 = vsel %vm512, %v2243, %v2245
        %v2250 = vadd.f32 %v2166, %v2246
        %v2251 = vadd.f32 %v2167, %v2247
        %v2252 = vstv %s2232
        %v2253 = vmul.f32 %v2252, %v2033
        %v2254 = vmul.f32 %v2252, %v2028
        %v2255 = vmul.f32 %v2252, %v2034
        %2259 = vrot.lane.b32.xlu0 %v2253, 32
        %v2260 = vpop.permute.xlu0 %2259
        %2261 = vrot.lane.b32.xlu0 %v2254, 32
        %v2262 = vpop.permute.xlu0 %2261
        %2263 = vrot.lane.b32.xlu0 %v2255, 32
        %v2264 = vpop.permute.xlu0 %2263
        %v2265 = vsel %vm512, %v2260, %v2262
        %v2266 = vsel %vm512, %v2262, %v2264
        %v2269 = vadd.f32 %v2185, %v2265
        %v2270 = vadd.f32 %v2186, %v2266
        %2274 = vrot.lane.b32.xlu0 %v2207, 112
        %v2275 = vpop.permute.xlu0 %2274
        %2276 = vrot.lane.b32.xlu0 %v2208, 112
        %v2277 = vpop.permute.xlu0 %2276
        %2278 = vrot.lane.b32.xlu0 %v2209, 112
        %v2279 = vpop.permute.xlu0 %2278
        %vm2280 = vcmask 916480
        %v2281 = vsel %vm2280, %v2275, %v2277
        %v2282 = vsel %vm2280, %v2277, %v2279
        %v2285 = vadd.f32 %v2250, %v2281
        %v2286 = vadd.f32 %v2251, %v2282
        %2290 = vrot.lane.b32.xlu0 %v2228, 112
        %v2291 = vpop.permute.xlu0 %2290
        %2292 = vrot.lane.b32.xlu0 %v2229, 112
        %v2293 = vpop.permute.xlu0 %2292
        %2294 = vrot.lane.b32.xlu0 %v2230, 112
        %v2295 = vpop.permute.xlu0 %2294
        %v2296 = vsel %vm2280, %v2291, %v2293
        %v2297 = vsel %vm2280, %v2293, %v2295
        %v2300 = vadd.f32 %v2269, %v2296
        %v2301 = vadd.f32 %v2270, %v2297
        %v2302 = vadd.f32 %v2285, %v2300
        %v2303 = vadd.f32 %v2286, %v2301
        %v2304 = vsub.f32 0.0, %v2302
        %v2305 = vsub.f32 0.0, %v2303
        %v2306 = vmul.f32 %v2304, 1.442695
        %v2307 = vpow.pop %v2306
        %v2308 = vmul.f32 %v2305, 1.442695
        %v2309 = vpow.pop %v2308
        %v2310 = vadd.f32 %v2307, 1.0
        %v2311 = vadd.f32 %v2309, 1.0
        %v2312 = vrcp.pop %v2310
        %v2313 = vmul.f32 %v2310, %v2312
        %v2314 = vsub.f32 1.0, %v2313
        %v2315 = vmul.f32 %v2312, %v2314
        %v2316 = vadd.f32 %v2312, %v2315
        %vm2317 = vweird.f32 %v2310
        %vm2318 = vweird.f32 %v2312
        %vm2319 = vmor %vm2317, %vm2318
        %v2320 = vsel %vm2319, %v2312, %v2316
        %v2321 = vand.u32 2147483647, %v2310
        %vm2322 = vcmp.eq.f32.partialorder %v2321, 8.507059e+37
        %v2323 = vand.u32 %v2310, 2147483648
        %v2324 = vor.u32 1.1754944e-38, %v2323
        %v2325 = vsel %vm2322, %v2324, %v2320
        %v2326 = vrcp.pop %v2311
        %v2327 = vmul.f32 %v2311, %v2326
        %v2328 = vsub.f32 1.0, %v2327
        %v2329 = vmul.f32 %v2326, %v2328
        %v2330 = vadd.f32 %v2326, %v2329
        %vm2331 = vweird.f32 %v2311
        %vm2332 = vweird.f32 %v2326
        %vm2333 = vmor %vm2331, %vm2332
        %v2334 = vsel %vm2333, %v2326, %v2330
        %v2335 = vand.u32 2147483647, %v2311
        %vm2336 = vcmp.eq.f32.partialorder %v2335, 8.507059e+37
        %v2337 = vand.u32 %v2311, 2147483648
        %v2338 = vor.u32 1.1754944e-38, %v2337
        %v2339 = vsel %vm2336, %v2338, %v2334
        %v2340 = vperm.slane %v2325, 0
        %v2341 = vperm.slane %v2339, 0
        %v2344 = vrot.slane %v2341, 4
        %vm2345 = vcmask 1043456
        %v2346 = vsel %vm2345, %v2340, %v2344
        %v2348 = vmul.f32 %v218, %v2346
        %2349 = vst [vmem:[%s217] sm:$0xff] %v2348
        %s2350 = sand.u32 %s98, 1
        %s2351 = scalar_lea.sflag [#allocation4], %s2350
        %s2352 = sand.u32 %s98, 1
        %s2353 = smul.addr %s2352, 8
        %s2354 = scalar_lea.vmem [#allocation9], %s2353
        // Predicated region
        $region45: #{tpu_custom_call.1} parent=31 // pred_check
          %p2355 = pneg %p108
        $region46: #{tpu_custom_call.1} parent=31 // pred_check_branch
          %2357 = sbr.rel (%p2355) target = $region48
        $region47: #{tpu_custom_call.1} parent=31 // pred_region
          %2359 = vsyncadd %s2351, 0
          %s2360 = smul.addr %s22, 2
          %s2361 = smul.addr %s2360, 4
          %s2362 = scalar_lea.hbm %s3, %s2361
          %s2364 = sshll.u32 %s2354, 4
          %s2365 = int_to_ptr.vmem [resolvable:$true] %s2364
          %s2366 = sshll.u32 %s2362, 4
          %s2367 = int_to_ptr.hbm [resolvable:$true] %s2366
          %2369 = dma.vmem_to_hbm [thread:$0]  %s2365, 128, %s2367, %s2351
        $region48: #{tpu_custom_call.1} parent=31 // pred_fallthru
          _
      $region32: #{tpu_custom_call.1} parent=5 // pred_fallthru
        _
      %p2370 = scmp.le.s32.totalorder 2, %s17
      // Predicated region
      $region49: #{tpu_custom_call.1} parent=5 // pred_check
        %p2371 = pneg %p2370
      $region50: #{tpu_custom_call.1} parent=5 // pred_check_branch
        %2373 = sbr.rel (%p2371) target = $region52
      $region51: #{tpu_custom_call.1} parent=5 // pred_region
        %s2374 = ssub.s32 %s17, 2
        // Predicated region
        $region53: #{tpu_custom_call.1} parent=51 // pred_check
          %p2375 = pneg %p114
        $region54: #{tpu_custom_call.1} parent=51 // pred_check_branch
          %2377 = sbr.rel (%p2375) target = $region56
        $region55: #{tpu_custom_call.1} parent=51 // pred_region
          %s2378 = sand.u32 %s99, 1
          %s2379 = scalar_lea.sflag [#allocation4], %s2378
          %s2380 = sand.u32 %s99, 1
          %s2381 = smul.addr %s2380, 8
          %s2382 = scalar_lea.vmem [#allocation9], %s2381
          %2384 = dma.done %s2379, 128
        $region56: #{tpu_custom_call.1} parent=51 // pred_fallthru
          _
      $region52: #{tpu_custom_call.1} parent=5 // pred_fallthru
        _
    $region6: #{tpu_custom_call.1} parent=1 // loop_footer
      %s21 = sadd.s32 1, %s17
    $region7: #{tpu_custom_call.1} parent=1 // loop_footer_branch
      %16 = sbr.rel target = $region3
    $region8: #{tpu_custom_call.1} parent=1 // loop_exit
      _
    %2385 = vsyncpa [#allocation3], 1
    %s2386 = scalar_lea.sflag [#allocation3], 1
    %2387 = vsyncpa %s2386, 1
    %2388 = vsyncpa [#allocation8], 1
    %2389 = vsyncpa [#allocation4], 1
    %s2390 = scalar_lea.sflag [#allocation4], 1
    %2391 = vsyncpa %s2390, 1
    %2392 = vsyncpa [#allocation5], 1
    %s2393 = scalar_lea.sflag [#allocation5], 1
    %2394 = vsyncpa %s2393, 1

</llo_original>
